<compile_context>
chip_gen: v6e
topology: v6e:2x2x1
jax: 0.10.0
libtpu: 0.0.40
codegen_flags: <defaults>
</compile_context>

<pallas_src>
import math

import jax
import jax.numpy as jnp
from jax.experimental import pallas as pl
from jax.experimental.pallas import tpu as pltpu

H = 64          # hidden width of the original module
OUT = 3         # true output width
OUT_PAD = 128   # lane-dense padded output width (per packed half)


def _softplus_beta100(x):
    # softplus(x; beta=100) = 0.01 * (max(z,0) + log1p(exp(-|z|))), z = 100*x.
    # Numerically equal to PyTorch Softplus(beta=100, threshold=20) to ~1e-11.
    z = x * 100.0
    return (jnp.maximum(z, 0.0) + jnp.log1p(jnp.exp(-jnp.abs(z)))) * 0.01


def _mlp_kernel(x_ref, w0_ref, wh_ref, b_ref, w4_ref, o_ref):
    # x_ref:  (tm, 2*p_in)       packed rows (2 samples per row)
    # w0_ref: (2*p_in, 128)      block-diag first layer
    # wh_ref: (3, 128, 128)      block-diag hidden layers
    # b_ref:  (4, 1, 128)        biases tiled across the two packed halves
    # w4_ref: (128, 256)         block-diag, zero-padded final layer
    # o_ref:  (tm, 256)
    h = jnp.dot(x_ref[...], w0_ref[...], preferred_element_type=jnp.float32)
    h = _softplus_beta100(h + b_ref[0])
    for k in range(3):
        h = jnp.dot(h, wh_ref[k], preferred_element_type=jnp.float32)
        h = _softplus_beta100(h + b_ref[k + 1])
    o_ref[...] = jnp.dot(h, w4_ref[...], preferred_element_type=jnp.float32)


def _block_diag2(w):
    fin, fout = w.shape
    z = jnp.zeros((fin, fout), w.dtype)
    top = jnp.concatenate([w, z], axis=1)
    bot = jnp.concatenate([z, w], axis=1)
    return jnp.concatenate([top, bot], axis=0)


def _prep_params(params, inp_dim, p_in):
    """Pack weights for the lane-packed (2 samples per vreg row) kernel."""
    w0 = params["w0"]                                              # (inp_dim, 64)
    w0p = jnp.zeros((p_in, H), jnp.float32).at[:inp_dim, :].set(w0)
    w4 = params["w4"]                                              # (64, 3)
    w4p = jnp.zeros((H, OUT_PAD), jnp.float32).at[:, :OUT].set(w4)

    w0_bd = _block_diag2(w0p)                                      # (2*p_in, 128)
    wh_bd = jnp.stack([_block_diag2(params[f"w{k}"]) for k in (1, 2, 3)])  # (3,128,128)
    w4_bd = _block_diag2(w4p)                                      # (128, 256)
    b_bd = jnp.stack([jnp.concatenate([params[f"b{k}"], params[f"b{k}"]], axis=-1)
                      for k in range(4)])                          # (4, 1, 128)
    return w0_bd, wh_bd, b_bd, w4_bd


def _choose_tm(np_rows):
    # Large tiles amortize the ~0.35us per-grid-step overhead; keep >= 4 tiles
    # when possible so the "parallel" axis can shard across both v7x TensorCores.
    if np_rows <= 8:
        return 8
    t = min(1024, max(8, np_rows // 4))
    return max(8, (t // 8) * 8)


def mlp_template_forward(x, params, *, tm=None):
    """x: (N, inp_dim) float32. params: dict of weights/biases. Returns (N, 3)."""
    N, inp_dim = x.shape
    p_in = max(8, -(-inp_dim // 8) * 8)        # pad features to a multiple of 8

    np_rows = -(-N // 2)                       # packed rows before tiling pad
    if tm is None:
        tm = _choose_tm(np_rows)
    tm = max(8, (int(tm) // 8) * 8)
    n_tiles = -(-np_rows // tm)                # cdiv
    np_pad = n_tiles * tm
    n_pad = 2 * np_pad

    # Zero-pad rows/features, then pack two samples per row along the lane axis.
    xp = jnp.zeros((n_pad, p_in), jnp.float32).at[:N, :inp_dim].set(x)
    x_packed = xp.reshape(np_pad, 2 * p_in)

    w0_bd, wh_bd, b_bd, w4_bd = _prep_params(params, inp_dim, p_in)

    def full(a):
        nd = a.ndim
        return pl.BlockSpec(a.shape, lambda i, _nd=nd: (0,) * _nd)

    out = pl.pallas_call(
        _mlp_kernel,
        out_shape=jax.ShapeDtypeStruct((np_pad, 2 * OUT_PAD), jnp.float32),
        grid_spec=pltpu.PrefetchScalarGridSpec(
            num_scalar_prefetch=0,
            grid=(n_tiles,),
            in_specs=[
                pl.BlockSpec((tm, 2 * p_in), lambda i: (i, 0)),
                full(w0_bd),
                full(wh_bd),
                full(b_bd),
                full(w4_bd),
            ],
            out_specs=pl.BlockSpec((tm, 2 * OUT_PAD), lambda i: (i, 0)),
        ),
        compiler_params=pltpu.CompilerParams(
            dimension_semantics=("parallel",)),
    )(x_packed, w0_bd, wh_bd, b_bd, w4_bd)

    # Unpack the two lane halves back into rows, drop padding.
    return out.reshape(n_pad, OUT_PAD)[:N, :OUT]


def init_params(key, inp_dim):
    """Deterministic PyTorch-style (uniform +-1/sqrt(fan_in)) init.

    Weights are stored as (in_features, out_features) so forward is y = x @ W + b.
    """
    dims = [(inp_dim, 64), (64, 64), (64, 64), (64, 64), (64, 3)]
    params = {}
    keys = jax.random.split(key, 2 * len(dims))
    for li, (fin, fout) in enumerate(dims):
        bound = 1.0 / math.sqrt(fin)
        w = jax.random.uniform(keys[2 * li], (fin, fout), jnp.float32,
                               minval=-bound, maxval=bound)
        params[f"w{li}"] = w
        if li < 4:  # last layer has bias=False
            b = jax.random.uniform(keys[2 * li + 1], (1, fout), jnp.float32,
                                   minval=-bound, maxval=bound)
            params[f"b{li}"] = b
    return params


def _softplus_torch(x):
    # Exact PyTorch Softplus(beta=100, threshold=20) semantics (for the reference).
    beta = 100.0
    z = x * beta
    safe = jnp.minimum(z, 20.0)
    return jnp.where(z > 20.0, x, jnp.log1p(jnp.exp(safe)) / beta)


def _reference(x, params):
    h = x
    for li in range(4):
        h = h @ params[f"w{li}"] + params[f"b{li}"]
        h = _softplus_torch(h)
    return h @ params["w4"]


if __name__ == "__main__":
    key = jax.random.PRNGKey(0)
    inp_dim = 5
    N = 1000  # deliberately not a tile multiple: exercises cdiv grid + padding path

    kx, kp = jax.random.split(key)
    x = jax.random.normal(kx, (N, inp_dim), jnp.float32)
    params = init_params(kp, inp_dim)

    out = jax.block_until_ready(mlp_template_forward(x, params))

    ref = _reference(x, params)
    assert out.shape == (N, 3)
    assert jnp.allclose(out, ref, atol=1e-4, rtol=1e-4), float(
        jnp.max(jnp.abs(out - ref)))

    print("KERNEL_OK")
</pallas_src>

<mosaic_0001>
module attributes {stable_mosaic.version = 11 : i64} {
  func.func @_mlp_kernel(%arg0: i32, %arg1: memref<120x16xf32, #tpu.memory_space<vmem>>, %arg2: memref<16x128xf32, #tpu.memory_space<vmem>>, %arg3: memref<3x128x128xf32, #tpu.memory_space<vmem>>, %arg4: memref<4x1x128xf32, #tpu.memory_space<vmem>>, %arg5: memref<128x256xf32, #tpu.memory_space<vmem>>, %arg6: memref<120x256xf32, #tpu.memory_space<vmem>>) attributes {dimension_semantics = [#tpu.dimension_semantics<parallel>], iteration_bounds = array<i64: 5>, scalar_prefetch = 0 : i64, scratch_operands = 0 : i64, tpu.core_type = #tpu.core_type<tc>, window_params = [{transform_indices = @transform_0, window_bounds = array<i64: 120, 16>}, {pipeline_mode = #tpu.pipeline_mode<synchronous>, transform_indices = @transform_1, window_bounds = array<i64: 16, 128>}, {pipeline_mode = #tpu.pipeline_mode<synchronous>, transform_indices = @transform_2, window_bounds = array<i64: 3, 128, 128>}, {pipeline_mode = #tpu.pipeline_mode<synchronous>, transform_indices = @transform_3, window_bounds = array<i64: 4, 1, 128>}, {pipeline_mode = #tpu.pipeline_mode<synchronous>, transform_indices = @transform_4, window_bounds = array<i64: 128, 256>}, {transform_indices = @transform_5, window_bounds = array<i64: 120, 256>}]} {
    %c0 = arith.constant 0 : index
    %c0_0 = arith.constant 0 : index
    %0 = vector.load %arg1[%c0, %c0_0] : memref<120x16xf32, #tpu.memory_space<vmem>>, vector<120x16xf32>
    %c0_1 = arith.constant 0 : index
    %c0_2 = arith.constant 0 : index
    %1 = vector.load %arg2[%c0_1, %c0_2] : memref<16x128xf32, #tpu.memory_space<vmem>>, vector<16x128xf32>
    %cst = arith.constant dense<0.000000e+00> : vector<120x128xf32>
    %2 = tpu.matmul %0, %1, %cst {dimension_numbers = #tpu.dot_dimension_numbers<[1], [0], [0], [1], [0, 0, 1, 1], [], []>} : vector<120x16xf32>, vector<16x128xf32>, vector<120x128xf32> -> vector<120x128xf32>
    %c0_3 = arith.constant 0 : index
    %c0_4 = arith.constant 0 : index
    %c0_5 = arith.constant 0 : index
    %3 = vector.load %arg4[%c0_3, %c0_4, %c0_5] : memref<4x1x128xf32, #tpu.memory_space<vmem>>, vector<1x1x128xf32>
    %4 = vector.shape_cast %3 : vector<1x1x128xf32> to vector<1x128xf32>
    %5 = vector.broadcast %4 : vector<1x128xf32> to vector<120x128xf32>
    %6 = arith.addf %2, %5 : vector<120x128xf32>
    %cst_6 = arith.constant 1.000000e+02 : f32
    %7 = vector.broadcast %cst_6 : f32 to vector<120x128xf32>
    %8 = arith.mulf %6, %7 : vector<120x128xf32>
    %cst_7 = arith.constant 0.000000e+00 : f32
    %9 = vector.broadcast %cst_7 : f32 to vector<120x128xf32>
    %10 = arith.maximumf %8, %9 : vector<120x128xf32>
    %11 = math.absf %8 : vector<120x128xf32>
    %cst_8 = arith.constant 0.000000e+00 : f32
    %12 = vector.broadcast %cst_8 : f32 to vector<120x128xf32>
    %13 = arith.subf %12, %11 : vector<120x128xf32>
    %14 = math.exp %13 : vector<120x128xf32>
    %15 = math.log1p %14 : vector<120x128xf32>
    %16 = arith.addf %10, %15 : vector<120x128xf32>
    %cst_9 = arith.constant 0.00999999977 : f32
    %17 = vector.broadcast %cst_9 : f32 to vector<120x128xf32>
    %18 = arith.mulf %16, %17 : vector<120x128xf32>
    %c0_10 = arith.constant 0 : index
    %c0_11 = arith.constant 0 : index
    %c0_12 = arith.constant 0 : index
    %19 = vector.load %arg3[%c0_10, %c0_11, %c0_12] : memref<3x128x128xf32, #tpu.memory_space<vmem>>, vector<1x128x128xf32>
    %20 = vector.shape_cast %19 : vector<1x128x128xf32> to vector<128x128xf32>
    %cst_13 = arith.constant dense<0.000000e+00> : vector<120x128xf32>
    %21 = tpu.matmul %18, %20, %cst_13 {dimension_numbers = #tpu.dot_dimension_numbers<[1], [0], [0], [1], [0, 0, 1, 1], [], []>} : vector<120x128xf32>, vector<128x128xf32>, vector<120x128xf32> -> vector<120x128xf32>
    %c1 = arith.constant 1 : index
    %c0_14 = arith.constant 0 : index
    %c0_15 = arith.constant 0 : index
    %22 = vector.load %arg4[%c1, %c0_14, %c0_15] : memref<4x1x128xf32, #tpu.memory_space<vmem>>, vector<1x1x128xf32>
    %23 = vector.shape_cast %22 : vector<1x1x128xf32> to vector<1x128xf32>
    %24 = vector.broadcast %23 : vector<1x128xf32> to vector<120x128xf32>
    %25 = arith.addf %21, %24 : vector<120x128xf32>
    %cst_16 = arith.constant 1.000000e+02 : f32
    %26 = vector.broadcast %cst_16 : f32 to vector<120x128xf32>
    %27 = arith.mulf %25, %26 : vector<120x128xf32>
    %cst_17 = arith.constant 0.000000e+00 : f32
    %28 = vector.broadcast %cst_17 : f32 to vector<120x128xf32>
    %29 = arith.maximumf %27, %28 : vector<120x128xf32>
    %30 = math.absf %27 : vector<120x128xf32>
    %cst_18 = arith.constant 0.000000e+00 : f32
    %31 = vector.broadcast %cst_18 : f32 to vector<120x128xf32>
    %32 = arith.subf %31, %30 : vector<120x128xf32>
    %33 = math.exp %32 : vector<120x128xf32>
    %34 = math.log1p %33 : vector<120x128xf32>
    %35 = arith.addf %29, %34 : vector<120x128xf32>
    %cst_19 = arith.constant 0.00999999977 : f32
    %36 = vector.broadcast %cst_19 : f32 to vector<120x128xf32>
    %37 = arith.mulf %35, %36 : vector<120x128xf32>
    %c1_20 = arith.constant 1 : index
    %c0_21 = arith.constant 0 : index
    %c0_22 = arith.constant 0 : index
    %38 = vector.load %arg3[%c1_20, %c0_21, %c0_22] : memref<3x128x128xf32, #tpu.memory_space<vmem>>, vector<1x128x128xf32>
    %39 = vector.shape_cast %38 : vector<1x128x128xf32> to vector<128x128xf32>
    %cst_23 = arith.constant dense<0.000000e+00> : vector<120x128xf32>
    %40 = tpu.matmul %37, %39, %cst_23 {dimension_numbers = #tpu.dot_dimension_numbers<[1], [0], [0], [1], [0, 0, 1, 1], [], []>} : vector<120x128xf32>, vector<128x128xf32>, vector<120x128xf32> -> vector<120x128xf32>
    %c2 = arith.constant 2 : index
    %c0_24 = arith.constant 0 : index
    %c0_25 = arith.constant 0 : index
    %41 = vector.load %arg4[%c2, %c0_24, %c0_25] : memref<4x1x128xf32, #tpu.memory_space<vmem>>, vector<1x1x128xf32>
    %42 = vector.shape_cast %41 : vector<1x1x128xf32> to vector<1x128xf32>
    %43 = vector.broadcast %42 : vector<1x128xf32> to vector<120x128xf32>
    %44 = arith.addf %40, %43 : vector<120x128xf32>
    %cst_26 = arith.constant 1.000000e+02 : f32
    %45 = vector.broadcast %cst_26 : f32 to vector<120x128xf32>
    %46 = arith.mulf %44, %45 : vector<120x128xf32>
    %cst_27 = arith.constant 0.000000e+00 : f32
    %47 = vector.broadcast %cst_27 : f32 to vector<120x128xf32>
    %48 = arith.maximumf %46, %47 : vector<120x128xf32>
    %49 = math.absf %46 : vector<120x128xf32>
    %cst_28 = arith.constant 0.000000e+00 : f32
    %50 = vector.broadcast %cst_28 : f32 to vector<120x128xf32>
    %51 = arith.subf %50, %49 : vector<120x128xf32>
    %52 = math.exp %51 : vector<120x128xf32>
    %53 = math.log1p %52 : vector<120x128xf32>
    %54 = arith.addf %48, %53 : vector<120x128xf32>
    %cst_29 = arith.constant 0.00999999977 : f32
    %55 = vector.broadcast %cst_29 : f32 to vector<120x128xf32>
    %56 = arith.mulf %54, %55 : vector<120x128xf32>
    %c2_30 = arith.constant 2 : index
    %c0_31 = arith.constant 0 : index
    %c0_32 = arith.constant 0 : index
    %57 = vector.load %arg3[%c2_30, %c0_31, %c0_32] : memref<3x128x128xf32, #tpu.memory_space<vmem>>, vector<1x128x128xf32>
    %58 = vector.shape_cast %57 : vector<1x128x128xf32> to vector<128x128xf32>
    %cst_33 = arith.constant dense<0.000000e+00> : vector<120x128xf32>
    %59 = tpu.matmul %56, %58, %cst_33 {dimension_numbers = #tpu.dot_dimension_numbers<[1], [0], [0], [1], [0, 0, 1, 1], [], []>} : vector<120x128xf32>, vector<128x128xf32>, vector<120x128xf32> -> vector<120x128xf32>
    %c3 = arith.constant 3 : index
    %c0_34 = arith.constant 0 : index
    %c0_35 = arith.constant 0 : index
    %60 = vector.load %arg4[%c3, %c0_34, %c0_35] : memref<4x1x128xf32, #tpu.memory_space<vmem>>, vector<1x1x128xf32>
    %61 = vector.shape_cast %60 : vector<1x1x128xf32> to vector<1x128xf32>
    %62 = vector.broadcast %61 : vector<1x128xf32> to vector<120x128xf32>
    %63 = arith.addf %59, %62 : vector<120x128xf32>
    %cst_36 = arith.constant 1.000000e+02 : f32
    %64 = vector.broadcast %cst_36 : f32 to vector<120x128xf32>
    %65 = arith.mulf %63, %64 : vector<120x128xf32>
    %cst_37 = arith.constant 0.000000e+00 : f32
    %66 = vector.broadcast %cst_37 : f32 to vector<120x128xf32>
    %67 = arith.maximumf %65, %66 : vector<120x128xf32>
    %68 = math.absf %65 : vector<120x128xf32>
    %cst_38 = arith.constant 0.000000e+00 : f32
    %69 = vector.broadcast %cst_38 : f32 to vector<120x128xf32>
    %70 = arith.subf %69, %68 : vector<120x128xf32>
    %71 = math.exp %70 : vector<120x128xf32>
    %72 = math.log1p %71 : vector<120x128xf32>
    %73 = arith.addf %67, %72 : vector<120x128xf32>
    %cst_39 = arith.constant 0.00999999977 : f32
    %74 = vector.broadcast %cst_39 : f32 to vector<120x128xf32>
    %75 = arith.mulf %73, %74 : vector<120x128xf32>
    %c0_40 = arith.constant 0 : index
    %c0_41 = arith.constant 0 : index
    %76 = vector.load %arg5[%c0_40, %c0_41] : memref<128x256xf32, #tpu.memory_space<vmem>>, vector<128x256xf32>
    %cst_42 = arith.constant dense<0.000000e+00> : vector<120x256xf32>
    %77 = tpu.matmul %75, %76, %cst_42 {dimension_numbers = #tpu.dot_dimension_numbers<[1], [0], [0], [1], [0, 0, 1, 1], [], []>} : vector<120x128xf32>, vector<128x256xf32>, vector<120x256xf32> -> vector<120x256xf32>
    %c0_43 = arith.constant 0 : index
    %c0_44 = arith.constant 0 : index
    %78 = vector.load %arg6[%c0_43, %c0_44] : memref<120x256xf32, #tpu.memory_space<vmem>>, vector<120x256xf32>
    tpu.vector_store %arg6[%c0_43, %c0_44], %77 {strides = array<i32>} : memref<120x256xf32, #tpu.memory_space<vmem>>, vector<120x256xf32>,
    return
  }
  func.func @transform_0(%arg0: i32) -> (i32, i32) {
    %c0_i32 = arith.constant 0 : i32
    %c0_i32_0 = arith.constant 0 : i32
    return %arg0, %c0_i32 : i32, i32
  }
  func.func @transform_1(%arg0: i32) -> (i32, i32) {
    %c0_i32 = arith.constant 0 : i32
    %c0_i32_0 = arith.constant 0 : i32
    %c0_i32_1 = arith.constant 0 : i32
    return %c0_i32, %c0_i32_0 : i32, i32
  }
  func.func @transform_2(%arg0: i32) -> (i32, i32, i32) {
    %c0_i32 = arith.constant 0 : i32
    %c0_i32_0 = arith.constant 0 : i32
    %c0_i32_1 = arith.constant 0 : i32
    %c0_i32_2 = arith.constant 0 : i32
    return %c0_i32, %c0_i32_0, %c0_i32_1 : i32, i32, i32
  }
  func.func @transform_3(%arg0: i32) -> (i32, i32, i32) {
    %c0_i32 = arith.constant 0 : i32
    %c0_i32_0 = arith.constant 0 : i32
    %c0_i32_1 = arith.constant 0 : i32
    %c0_i32_2 = arith.constant 0 : i32
    return %c0_i32, %c0_i32_0, %c0_i32_1 : i32, i32, i32
  }
  func.func @transform_4(%arg0: i32) -> (i32, i32) {
    %c0_i32 = arith.constant 0 : i32
    %c0_i32_0 = arith.constant 0 : i32
    %c0_i32_1 = arith.constant 0 : i32
    return %c0_i32, %c0_i32_0 : i32, i32
  }
  func.func @transform_5(%arg0: i32) -> (i32, i32) {
    %c0_i32 = arith.constant 0 : i32
    %c0_i32_0 = arith.constant 0 : i32
    return %arg0, %c0_i32 : i32, i32
  }
}

</mosaic_0001>

<llo_original>
// kernel: tpu_custom_call.1
$region0: #{tpu_custom_call.1}
  #allocation0 [shape = 'u32[]', space=smem, size = 0x4, offset = 0x4, fixed_abs, tag = 'smem constant byte address 0x4 - core index']
  #allocation1 [shape = 'u32[144,128]{1,0:T(1,128)}', space=vmem, size = 0x12000, scoped, tag = 'internal scratch']
  %s0 = inlined_call_operand.vmem [shape: f32[600,16], index: 0, kind: input, shape index: {}]
  %s1 = inlined_call_operand.vmem [shape: f32[16,128], index: 1, kind: input, shape index: {}]
  %s2 = inlined_call_operand.vmem [shape: f32[3,128,128], index: 2, kind: input, shape index: {}]
  %s3 = inlined_call_operand.vmem [shape: f32[4,1,128], index: 3, kind: input, shape index: {}]
  %s4 = inlined_call_operand.vmem [shape: f32[128,256], index: 4, kind: input, shape index: {}]
  %s5 = inlined_call_operand.hbm [shape: f32[600,256], index: 5, kind: output, shape index: {}]
  %s6 = sld [smem:[#allocation0]]
  $region53: #{tpu_custom_call.1} parent=0
    _
  %s8 = ssub.s32 1, %s6
  %s9 = scalar_select 0, %s8, %s6
  $region1: #{tpu_custom_call.1} parent=0
    #allocation2 [shape = 'u8[245760]{0}', space=vmem, size = 0x3c000, scoped, tag = 'output window, operand 0']
    #allocation3 [shape = 's32[2]{0}', space=sflag, size = 0x8, scoped, tag = 'scoped memory for tpu_custom_call.1']
    %10 = vsyncpa [#allocation3], 0
    %s11 = scalar_lea.sflag [#allocation3], 1
    %12 = vsyncpa %s11, 0
    loop: start=0, step=1, limit=7
    $region2: #{tpu_custom_call.1} parent=1 // loop_pre_header
      _
    $region3: #{tpu_custom_call.1} parent=1 // loop_header
      %s14 = sphi 0, %s18
      %p15 = scmp.ge.s32.totalorder %s14, 7
      %s24 = sphi 0, %s26
      %s27 = sphi 0, %s24
      %s28 = sphi 0, %s27
      %s44 = sphi 0, %s28
      %s48 = sphi 0, %s48
      %s50 = sphi 0, %s48
      %s51 = sphi 0, %s50
      %s65 = sphi 0, %s51
      %s69 = sphi 0, %s69
      %s71 = sphi 0, %s69
      %s72 = sphi 0, %s71
      %s86 = sphi 0, %s72
      %s90 = sphi 0, %s90
      %s92 = sphi 0, %s90
      %s93 = sphi 0, %s92
      %s107 = sphi 0, %s93
      %s111 = sphi 0, %s111
      %s113 = sphi 0, %s111
      %s114 = sphi 0, %s113
      %s128 = sphi 0, %s114
      %s134 = sphi 0, %s136
      %s137 = sphi 0, %s134
      %s138 = sphi 0, %s137
      %s154 = sphi 0, %s138
    $region4: #{tpu_custom_call.1} parent=1 // loop_header_branch
      %17 = sbr.rel (%p15) target = $region8
    $region5: #{tpu_custom_call.1} parent=1 // loop_body
      %s19 = ssub.s32 %s14, 1
      %s20 = ssub.s32 %s14, 2
      %s21 = sadd.s32 %s14, 1
      %s22 = ssub.s32 %s14, %s21
      %p23 = scmp.eq.s32.totalorder %s22, 0
      %s25 = sadd.s32 %s24, 1
      %s26 = scalar_select %p23, %s24, %s25
      %p29 = pneg %p23
      %p30 = scmp.eq.s32.totalorder %s14, 4
      %p31 = por %p29, %p30
      %p32 = scmp.ne.s32.totalorder %s24, %s27
      %p33 = scmp.eq.s32.totalorder %s14, 0
      %p34 = por %p32, %p33
      %p35 = scmp.ne.s32.totalorder %s24, %s27
      %p36 = scmp.eq.s32.totalorder %s19, 4
      %p37 = por %p35, %p36
      %p38 = scmp.ne.s32.totalorder %s27, %s28
      %p39 = scmp.eq.s32.totalorder %s19, 0
      %p40 = por %p38, %p39
      %p41 = scmp.ne.s32.totalorder %s27, %s28
      %p42 = scmp.eq.s32.totalorder %s20, 4
      %p43 = por %p41, %p42
      %p45 = scmp.ne.s32.totalorder %s28, %s44
      %p46 = scmp.eq.s32.totalorder %s20, 0
      %p47 = por %p45, %p46
      %s49 = sadd.s32 %s48, 1
      %p52 = scmp.eq.s32.totalorder %s14, 4
      %p53 = scmp.ne.s32.totalorder %s48, %s50
      %p54 = scmp.eq.s32.totalorder %s14, 0
      %p55 = por %p53, %p54
      %p56 = scmp.ne.s32.totalorder %s48, %s50
      %p57 = scmp.eq.s32.totalorder %s19, 4
      %p58 = por %p56, %p57
      %p59 = scmp.ne.s32.totalorder %s50, %s51
      %p60 = scmp.eq.s32.totalorder %s19, 0
      %p61 = por %p59, %p60
      %p62 = scmp.ne.s32.totalorder %s50, %s51
      %p63 = scmp.eq.s32.totalorder %s20, 4
      %p64 = por %p62, %p63
      %p66 = scmp.ne.s32.totalorder %s51, %s65
      %p67 = scmp.eq.s32.totalorder %s20, 0
      %p68 = por %p66, %p67
      %s70 = sadd.s32 %s69, 1
      %p73 = scmp.eq.s32.totalorder %s14, 4
      %p74 = scmp.ne.s32.totalorder %s69, %s71
      %p75 = scmp.eq.s32.totalorder %s14, 0
      %p76 = por %p74, %p75
      %p77 = scmp.ne.s32.totalorder %s69, %s71
      %p78 = scmp.eq.s32.totalorder %s19, 4
      %p79 = por %p77, %p78
      %p80 = scmp.ne.s32.totalorder %s71, %s72
      %p81 = scmp.eq.s32.totalorder %s19, 0
      %p82 = por %p80, %p81
      %p83 = scmp.ne.s32.totalorder %s71, %s72
      %p84 = scmp.eq.s32.totalorder %s20, 4
      %p85 = por %p83, %p84
      %p87 = scmp.ne.s32.totalorder %s72, %s86
      %p88 = scmp.eq.s32.totalorder %s20, 0
      %p89 = por %p87, %p88
      %s91 = sadd.s32 %s90, 1
      %p94 = scmp.eq.s32.totalorder %s14, 4
      %p95 = scmp.ne.s32.totalorder %s90, %s92
      %p96 = scmp.eq.s32.totalorder %s14, 0
      %p97 = por %p95, %p96
      %p98 = scmp.ne.s32.totalorder %s90, %s92
      %p99 = scmp.eq.s32.totalorder %s19, 4
      %p100 = por %p98, %p99
      %p101 = scmp.ne.s32.totalorder %s92, %s93
      %p102 = scmp.eq.s32.totalorder %s19, 0
      %p103 = por %p101, %p102
      %p104 = scmp.ne.s32.totalorder %s92, %s93
      %p105 = scmp.eq.s32.totalorder %s20, 4
      %p106 = por %p104, %p105
      %p108 = scmp.ne.s32.totalorder %s93, %s107
      %p109 = scmp.eq.s32.totalorder %s20, 0
      %p110 = por %p108, %p109
      %s112 = sadd.s32 %s111, 1
      %p115 = scmp.eq.s32.totalorder %s14, 4
      %p116 = scmp.ne.s32.totalorder %s111, %s113
      %p117 = scmp.eq.s32.totalorder %s14, 0
      %p118 = por %p116, %p117
      %p119 = scmp.ne.s32.totalorder %s111, %s113
      %p120 = scmp.eq.s32.totalorder %s19, 4
      %p121 = por %p119, %p120
      %p122 = scmp.ne.s32.totalorder %s113, %s114
      %p123 = scmp.eq.s32.totalorder %s19, 0
      %p124 = por %p122, %p123
      %p125 = scmp.ne.s32.totalorder %s113, %s114
      %p126 = scmp.eq.s32.totalorder %s20, 4
      %p127 = por %p125, %p126
      %p129 = scmp.ne.s32.totalorder %s114, %s128
      %p130 = scmp.eq.s32.totalorder %s20, 0
      %p131 = por %p129, %p130
      %s132 = ssub.s32 %s14, %s21
      %p133 = scmp.eq.s32.totalorder %s132, 0
      %s135 = sadd.s32 %s134, 1
      %s136 = scalar_select %p133, %s134, %s135
      %p139 = pneg %p133
      %p140 = scmp.eq.s32.totalorder %s14, 4
      %p141 = por %p139, %p140
      %p142 = scmp.ne.s32.totalorder %s134, %s137
      %p143 = scmp.eq.s32.totalorder %s14, 0
      %p144 = por %p142, %p143
      %p145 = scmp.ne.s32.totalorder %s134, %s137
      %p146 = scmp.eq.s32.totalorder %s19, 4
      %p147 = por %p145, %p146
      %p148 = scmp.ne.s32.totalorder %s137, %s138
      %p149 = scmp.eq.s32.totalorder %s19, 0
      %p150 = por %p148, %p149
      %p151 = scmp.ne.s32.totalorder %s137, %s138
      %p152 = scmp.eq.s32.totalorder %s20, 4
      %p153 = por %p151, %p152
      %p155 = scmp.ne.s32.totalorder %s138, %s154
      %p156 = scmp.eq.s32.totalorder %s20, 0
      %p157 = por %p155, %p156
      %p158 = scmp.le.s32.totalorder 1, %s14
      %p159 = scmp.lt.s32.totalorder %s14, 6
      %p160 = pnand %p158, %p159
      %p161 = pneg %p160
      // Predicated region
      $region9: #{tpu_custom_call.1} parent=5 // pred_check
        _
      $region10: #{tpu_custom_call.1} parent=5 // pred_check_branch
        %163 = sbr.rel (%p160) target = $region12
      $region11: #{tpu_custom_call.1} parent=5 // pred_region
        %s164 = ssub.s32 %s14, 1
        // Predicated region
        $region13: #{tpu_custom_call.1} parent=11 // pred_check
          %p165 = pneg %p61
        $region14: #{tpu_custom_call.1} parent=11 // pred_check_branch
          %167 = sbr.rel (%p165) target = $region16
        $region15: #{tpu_custom_call.1} parent=11 // pred_region
          _
        $region16: #{tpu_custom_call.1} parent=11 // pred_fallthru
          _
        // Predicated region
        $region17: #{tpu_custom_call.1} parent=11 // pred_check
          %p168 = pneg %p82
        $region18: #{tpu_custom_call.1} parent=11 // pred_check_branch
          %170 = sbr.rel (%p168) target = $region20
        $region19: #{tpu_custom_call.1} parent=11 // pred_region
          _
        $region20: #{tpu_custom_call.1} parent=11 // pred_fallthru
          _
        // Predicated region
        $region21: #{tpu_custom_call.1} parent=11 // pred_check
          %p171 = pneg %p103
        $region22: #{tpu_custom_call.1} parent=11 // pred_check_branch
          %173 = sbr.rel (%p171) target = $region24
        $region23: #{tpu_custom_call.1} parent=11 // pred_region
          _
        $region24: #{tpu_custom_call.1} parent=11 // pred_fallthru
          _
        // Predicated region
        $region25: #{tpu_custom_call.1} parent=11 // pred_check
          %p174 = pneg %p124
        $region26: #{tpu_custom_call.1} parent=11 // pred_check_branch
          %176 = sbr.rel (%p174) target = $region28
        $region27: #{tpu_custom_call.1} parent=11 // pred_region
          _
        $region28: #{tpu_custom_call.1} parent=11 // pred_fallthru
          _
      $region12: #{tpu_custom_call.1} parent=5 // pred_fallthru
        _
      %p177 = scmp.lt.s32.totalorder %s14, 5
      // Predicated region
      $region29: #{tpu_custom_call.1} parent=5 // pred_check
        %p178 = pneg %p177
      $region30: #{tpu_custom_call.1} parent=5 // pred_check_branch
        %180 = sbr.rel (%p178) target = $region32
      $region31: #{tpu_custom_call.1} parent=5 // pred_region
        // Predicated region
        $region33: #{tpu_custom_call.1} parent=31 // pred_check
          %p181 = pneg %p34
        $region34: #{tpu_custom_call.1} parent=31 // pred_check_branch
          %183 = sbr.rel (%p181) target = $region36
        $region35: #{tpu_custom_call.1} parent=31 // pred_region
          %s184 = smul.u32 15, %s14
          %p185 = scmp.lt.s32.totalorder %s184, 74
          %s186 = scalar_select %p185, %s184, 74
          %s187 = smul.addr %s186, 8
          %s188 = scalar_lea.vmem %s0, %s187
          %s189 = smul.u32 15, %s14
        $region36: #{tpu_custom_call.1} parent=31 // pred_fallthru
          _
      $region32: #{tpu_custom_call.1} parent=5 // pred_fallthru
        _
      %p190 = scmp.le.s32.totalorder 1, %s14
      %p191 = scmp.lt.s32.totalorder %s14, 6
      %p192 = pnand %p190, %p191
      %p193 = pneg %p192
      // Predicated region
      $region37: #{tpu_custom_call.1} parent=5 // pred_check
        _
      $region38: #{tpu_custom_call.1} parent=5 // pred_check_branch
        %195 = sbr.rel (%p192) target = $region40
      $region39: #{tpu_custom_call.1} parent=5 // pred_region
        %s196 = ssub.s32 %s14, 1
        %s197 = smul.u32 15, %s19
        %p198 = scmp.lt.s32.totalorder %s197, 74
        %s199 = scalar_select %p198, %s197, 74
        %s200 = smul.addr %s199, 8
        %s201 = scalar_lea.vmem %s0, %s200
        %p202 = pneg %p40
        %p203 = pneg %p37
        %p204 = pneg %p61
        %p205 = pneg %p58
        %p206 = pneg %p82
        %p207 = pneg %p79
        %p208 = pneg %p103
        %p209 = pneg %p100
        %p210 = pneg %p124
        %p211 = pneg %p121
        %p212 = pneg %p150
        %p213 = pneg %p147
        %s214 = sand.u32 %s137, 1
        %s215 = scalar_lea.sflag [#allocation3], %s214
        %s216 = sand.u32 %s137, 1
        %s217 = smul.addr %s216, 240
        %s218 = scalar_lea.vmem [#allocation2], %s217
        %s219 = smul.u32 15, %s19
        %p220 = scmp.lt.s32.totalorder %s219, 74
        %s221 = scalar_select %p220, %s219, 74
        %s222 = smul.addr %s221, 8
        %s223 = scalar_lea.vmem %s0, %s222
        %s224 = smul.u32 15, %s19
        %s225 = smul.u32 15, %s19
        %v226 = vld [vmem:[%s223] sm:$0xff]
        %v227 = vld [vmem:[%s223 + $0x8] sm:$0xff]
        %v228 = vld [vmem:[%s223 + $0x10] sm:$0xff]
        %v229 = vld [vmem:[%s223 + $0x18] sm:$0xff]
        %v230 = vld [vmem:[%s223 + $0x20] sm:$0xff]
        %v231 = vld [vmem:[%s223 + $0x28] sm:$0xff]
        %v232 = vld [vmem:[%s223 + $0x30] sm:$0xff]
        %v233 = vld [vmem:[%s223 + $0x38] sm:$0xff]
        %v234 = vld [vmem:[%s223 + $0x40] sm:$0xff]
        %v235 = vld [vmem:[%s223 + $0x48] sm:$0xff]
        %v236 = vld [vmem:[%s223 + $0x50] sm:$0xff]
        %v237 = vld [vmem:[%s223 + $0x58] sm:$0xff]
        %v238 = vld [vmem:[%s223 + $0x60] sm:$0xff]
        %v239 = vld [vmem:[%s223 + $0x68] sm:$0xff]
        %v240 = vld [vmem:[%s223 + $0x70] sm:$0xff]
        %v241 = vld [vmem:[%s1] sm:$0xff]
        %v242 = vld [vmem:[%s1 + $0x8] sm:$0xff]
        %v243 = vld [vmem:[%s3] sm:$0x1]
        %v245 = vlaneseq
        %v246 = vshrl.u32 %v245, 7
        %v247 = vsub.s32 0, %v246
        %v248 = vrot.slane %v243, %v247
        %vm250 = vcmask 130048
        %v252 = vsel %vm250, %v226, 0
        %v255 = vsel %vm250, %v227, 0
        %v258 = vsel %vm250, %v228, 0
        %v261 = vsel %vm250, %v229, 0
        %v264 = vsel %vm250, %v230, 0
        %v267 = vsel %vm250, %v231, 0
        %v270 = vsel %vm250, %v232, 0
        %v273 = vsel %vm250, %v233, 0
        %v276 = vsel %vm250, %v234, 0
        %v279 = vsel %vm250, %v235, 0
        %v282 = vsel %vm250, %v236, 0
        %v285 = vsel %vm250, %v237, 0
        %v288 = vsel %vm250, %v238, 0
        %v291 = vsel %vm250, %v239, 0
        %v294 = vsel %vm250, %v240, 0
        %296 = vmatprep.subr.mxu0 0.0
        %297 = vmatpush1.msra.mxu0 0.0
        %298 = vmatprep.subr.mxu0 0.0
        %299 = vmatpush1.msra.mxu0 0.0
        %300 = vmatprep.subr.mxu0 0.0
        %301 = vmatpush1.msra.mxu0 0.0
        %302 = vmatprep.subr.mxu0 0.0
        %303 = vmatpush1.msra.mxu0 0.0
        %304 = vmatprep.subr.mxu0 0.0
        %305 = vmatpush1.msra.mxu0 0.0
        %306 = vmatprep.subr.mxu0 0.0
        %307 = vmatpush1.msra.mxu0 0.0
        %308 = vmatprep.subr.mxu0 0.0
        %309 = vmatpush1.msra.mxu0 0.0
        %310 = vmatprep.subr.mxu0 0.0
        %311 = vmatpush1.msra.mxu0 0.0
        %312 = vmatprep.subr.mxu0 0.0
        %313 = vmatpush1.msra.mxu0 0.0
        %314 = vmatprep.subr.mxu0 0.0
        %315 = vmatpush1.msra.mxu0 0.0
        %316 = vmatprep.subr.mxu0 0.0
        %317 = vmatpush1.msra.mxu0 0.0
        %318 = vmatprep.subr.mxu0 0.0
        %319 = vmatpush1.msra.mxu0 0.0
        %320 = vmatprep.subr.mxu0 0.0
        %321 = vmatpush1.msra.mxu0 0.0
        %322 = vmatprep.subr.mxu0 0.0
        %323 = vmatpush1.msra.mxu0 0.0
        %324 = vmatprep.subr.mxu0 0.0
        %325 = vmatpush1.msra.mxu0 %v242
        %326 = vmatprep.subr.mxu0 0.0
        %327 = vmatpush1.msra.mxu0 %v241
        %328 = vmatprep.subr.mxu0 0.0
        %329 = vmatpush2.msra.mxu0 0.0
        %330 = vmatprep.subr.mxu0 0.0
        %331 = vmatpush2.msra.mxu0 0.0
        %332 = vmatprep.subr.mxu0 0.0
        %333 = vmatpush2.msra.mxu0 0.0
        %334 = vmatprep.subr.mxu0 0.0
        %335 = vmatpush2.msra.mxu0 0.0
        %336 = vmatprep.subr.mxu0 0.0
        %337 = vmatpush2.msra.mxu0 0.0
        %338 = vmatprep.subr.mxu0 0.0
        %339 = vmatpush2.msra.mxu0 0.0
        %340 = vmatprep.subr.mxu0 0.0
        %341 = vmatpush2.msra.mxu0 0.0
        %342 = vmatprep.subr.mxu0 0.0
        %343 = vmatpush2.msra.mxu0 0.0
        %344 = vmatprep.subr.mxu0 0.0
        %345 = vmatpush2.msra.mxu0 0.0
        %346 = vmatprep.subr.mxu0 0.0
        %347 = vmatpush2.msra.mxu0 0.0
        %348 = vmatprep.subr.mxu0 0.0
        %349 = vmatpush2.msra.mxu0 0.0
        %350 = vmatprep.subr.mxu0 0.0
        %351 = vmatpush2.msra.mxu0 0.0
        %352 = vmatprep.subr.mxu0 0.0
        %353 = vmatpush2.msra.mxu0 0.0
        %354 = vmatprep.subr.mxu0 0.0
        %355 = vmatpush2.msra.mxu0 0.0
        %356 = vmatprep.subr.mxu0 0.0
        %357 = vmatpush2.msra.mxu0 0.0
        %358 = vmatprep.subr.mxu0 0.0
        %359 = vmatpush2.msra.mxu0 0.0
        %360 = vmatprep.mubr.f32.mxu0 0.0
        %361 = vmatmul.mubr.f32.gmra.mxu0 %v252
        %v362 = vpop.f32.mrf.mxu0
        %v363 = vadd.f32 %v248, %v362
        %v364 = vpop.f32.mrf.mxu0
        %365 = vmatprep.mubr.f32.mxu0 0.0
        %366 = vmatmul.mubr.f32.gmra.mxu0 %v255
        %v367 = vpop.f32.mrf.mxu0
        %v368 = vadd.f32 %v248, %v367
        %v369 = vpop.f32.mrf.mxu0
        %370 = vmatprep.mubr.f32.mxu0 0.0
        %371 = vmatmul.mubr.f32.gmra.mxu0 %v258
        %v372 = vpop.f32.mrf.mxu0
        %v373 = vadd.f32 %v248, %v372
        %v374 = vpop.f32.mrf.mxu0
        %375 = vmatprep.mubr.f32.mxu0 0.0
        %376 = vmatmul.mubr.f32.gmra.mxu0 %v261
        %v377 = vpop.f32.mrf.mxu0
        %v378 = vadd.f32 %v248, %v377
        %v379 = vpop.f32.mrf.mxu0
        %380 = vmatprep.mubr.f32.mxu0 0.0
        %381 = vmatmul.mubr.f32.gmra.mxu0 %v264
        %v382 = vpop.f32.mrf.mxu0
        %v383 = vadd.f32 %v248, %v382
        %v384 = vpop.f32.mrf.mxu0
        %385 = vmatprep.mubr.f32.mxu0 0.0
        %386 = vmatmul.mubr.f32.gmra.mxu0 %v267
        %v387 = vpop.f32.mrf.mxu0
        %v388 = vadd.f32 %v248, %v387
        %v389 = vpop.f32.mrf.mxu0
        %390 = vmatprep.mubr.f32.mxu0 0.0
        %391 = vmatmul.mubr.f32.gmra.mxu0 %v270
        %v392 = vpop.f32.mrf.mxu0
        %v393 = vadd.f32 %v248, %v392
        %v394 = vpop.f32.mrf.mxu0
        %395 = vmatprep.mubr.f32.mxu0 0.0
        %396 = vmatmul.mubr.f32.gmra.mxu0 %v273
        %v397 = vpop.f32.mrf.mxu0
        %v398 = vadd.f32 %v248, %v397
        %v399 = vpop.f32.mrf.mxu0
        %400 = vmatprep.mubr.f32.mxu0 0.0
        %401 = vmatmul.mubr.f32.gmra.mxu0 %v276
        %v402 = vpop.f32.mrf.mxu0
        %v403 = vadd.f32 %v248, %v402
        %v404 = vpop.f32.mrf.mxu0
        %405 = vmatprep.mubr.f32.mxu0 0.0
        %406 = vmatmul.mubr.f32.gmra.mxu0 %v279
        %v407 = vpop.f32.mrf.mxu0
        %v408 = vadd.f32 %v248, %v407
        %v409 = vpop.f32.mrf.mxu0
        %410 = vmatprep.mubr.f32.mxu0 0.0
        %411 = vmatmul.mubr.f32.gmra.mxu0 %v282
        %v412 = vpop.f32.mrf.mxu0
        %v413 = vadd.f32 %v248, %v412
        %v414 = vpop.f32.mrf.mxu0
        %415 = vmatprep.mubr.f32.mxu0 0.0
        %416 = vmatmul.mubr.f32.gmra.mxu0 %v285
        %v417 = vpop.f32.mrf.mxu0
        %v418 = vadd.f32 %v248, %v417
        %v419 = vpop.f32.mrf.mxu0
        %420 = vmatprep.mubr.f32.mxu0 0.0
        %421 = vmatmul.mubr.f32.gmra.mxu0 %v288
        %v422 = vpop.f32.mrf.mxu0
        %v423 = vadd.f32 %v248, %v422
        %v424 = vpop.f32.mrf.mxu0
        %425 = vmatprep.mubr.f32.mxu0 0.0
        %426 = vmatmul.mubr.f32.gmra.mxu0 %v291
        %v427 = vpop.f32.mrf.mxu0
        %v428 = vadd.f32 %v248, %v427
        %v429 = vpop.f32.mrf.mxu0
        %430 = vmatprep.mubr.f32.mxu0 0.0
        %431 = vmatmul.mubr.f32.gmra.mxu0 %v294
        %v432 = vpop.f32.mrf.mxu0
        %v433 = vadd.f32 %v248, %v432
        %v434 = vpop.f32.mrf.mxu0
        %435 = vdwg.mxu0
        %v436 = vmul.f32 %v363, 100.0
        %v437 = vmul.f32 %v368, 100.0
        %v438 = vmul.f32 %v373, 100.0
        %v439 = vmul.f32 %v378, 100.0
        %v440 = vmul.f32 %v383, 100.0
        %v441 = vmul.f32 %v388, 100.0
        %v442 = vmul.f32 %v393, 100.0
        %v443 = vmul.f32 %v398, 100.0
        %v444 = vmul.f32 %v403, 100.0
        %v445 = vmul.f32 %v408, 100.0
        %v446 = vmul.f32 %v413, 100.0
        %v447 = vmul.f32 %v418, 100.0
        %v448 = vmul.f32 %v423, 100.0
        %v449 = vmul.f32 %v428, 100.0
        %v450 = vmul.f32 %v433, 100.0
        %v451 = vmax.f32 %v436, 0.0
        %v452 = vmax.f32 %v437, 0.0
        %v453 = vmax.f32 %v438, 0.0
        %v454 = vmax.f32 %v439, 0.0
        %v455 = vmax.f32 %v440, 0.0
        %v456 = vmax.f32 %v441, 0.0
        %v457 = vmax.f32 %v442, 0.0
        %v458 = vmax.f32 %v443, 0.0
        %v459 = vmax.f32 %v444, 0.0
        %v460 = vmax.f32 %v445, 0.0
        %v461 = vmax.f32 %v446, 0.0
        %v462 = vmax.f32 %v447, 0.0
        %v463 = vmax.f32 %v448, 0.0
        %v464 = vmax.f32 %v449, 0.0
        %v465 = vmax.f32 %v450, 0.0
        %v466 = vand.u32 2147483647, %v436
        %v467 = vand.u32 2147483647, %v437
        %v468 = vand.u32 2147483647, %v438
        %v469 = vand.u32 2147483647, %v439
        %v470 = vand.u32 2147483647, %v440
        %v471 = vand.u32 2147483647, %v441
        %v472 = vand.u32 2147483647, %v442
        %v473 = vand.u32 2147483647, %v443
        %v474 = vand.u32 2147483647, %v444
        %v475 = vand.u32 2147483647, %v445
        %v476 = vand.u32 2147483647, %v446
        %v477 = vand.u32 2147483647, %v447
        %v478 = vand.u32 2147483647, %v448
        %v479 = vand.u32 2147483647, %v449
        %v480 = vand.u32 2147483647, %v450
        %v481 = vsub.f32 0.0, %v466
        %v482 = vsub.f32 0.0, %v467
        %v483 = vsub.f32 0.0, %v468
        %v484 = vsub.f32 0.0, %v469
        %v485 = vsub.f32 0.0, %v470
        %v486 = vsub.f32 0.0, %v471
        %v487 = vsub.f32 0.0, %v472
        %v488 = vsub.f32 0.0, %v473
        %v489 = vsub.f32 0.0, %v474
        %v490 = vsub.f32 0.0, %v475
        %v491 = vsub.f32 0.0, %v476
        %v492 = vsub.f32 0.0, %v477
        %v493 = vsub.f32 0.0, %v478
        %v494 = vsub.f32 0.0, %v479
        %v495 = vsub.f32 0.0, %v480
        %v496 = vmul.f32 %v481, 1.442695
        %v497 = vpow.pop %v496
        %v498 = vmul.f32 %v482, 1.442695
        %v499 = vpow.pop %v498
        %v500 = vmul.f32 %v483, 1.442695
        %v501 = vpow.pop %v500
        %v502 = vmul.f32 %v484, 1.442695
        %v503 = vpow.pop %v502
        %v504 = vmul.f32 %v485, 1.442695
        %v505 = vpow.pop %v504
        %v506 = vmul.f32 %v486, 1.442695
        %v507 = vpow.pop %v506
        %v508 = vmul.f32 %v487, 1.442695
        %v509 = vpow.pop %v508
        %v510 = vmul.f32 %v488, 1.442695
        %v511 = vpow.pop %v510
        %v512 = vmul.f32 %v489, 1.442695
        %v513 = vpow.pop %v512
        %v514 = vmul.f32 %v490, 1.442695
        %v515 = vpow.pop %v514
        %v516 = vmul.f32 %v491, 1.442695
        %v517 = vpow.pop %v516
        %v518 = vmul.f32 %v492, 1.442695
        %v519 = vpow.pop %v518
        %v520 = vmul.f32 %v493, 1.442695
        %v521 = vpow.pop %v520
        %v522 = vmul.f32 %v494, 1.442695
        %v523 = vpow.pop %v522
        %v524 = vmul.f32 %v495, 1.442695
        %v525 = vpow.pop %v524
        %v526 = vadd.f32 %v497, 1.0
        %v527 = vlog2.pop %v526
        %v528 = vmul.f32 %v527, 0.6931472
        %v529 = vmul.f32 -0.5, %v497
        %v530 = vadd.f32 %v529, 1.0
        %v531 = vmul.f32 %v530, %v497
        %v532 = vand.u32 2147483647, %v497
        %vm533 = vcmp.lt.f32.partialorder %v532, 0.0004427343
        %v534 = vsel %vm533, %v531, %v528
        %v535 = vadd.f32 %v499, 1.0
        %v536 = vlog2.pop %v535
        %v537 = vmul.f32 %v536, 0.6931472
        %v538 = vmul.f32 -0.5, %v499
        %v539 = vadd.f32 %v538, 1.0
        %v540 = vmul.f32 %v539, %v499
        %v541 = vand.u32 2147483647, %v499
        %vm542 = vcmp.lt.f32.partialorder %v541, 0.0004427343
        %v543 = vsel %vm542, %v540, %v537
        %v544 = vadd.f32 %v501, 1.0
        %v545 = vlog2.pop %v544
        %v546 = vmul.f32 %v545, 0.6931472
        %v547 = vmul.f32 -0.5, %v501
        %v548 = vadd.f32 %v547, 1.0
        %v549 = vmul.f32 %v548, %v501
        %v550 = vand.u32 2147483647, %v501
        %vm551 = vcmp.lt.f32.partialorder %v550, 0.0004427343
        %v552 = vsel %vm551, %v549, %v546
        %v553 = vadd.f32 %v503, 1.0
        %v554 = vlog2.pop %v553
        %v555 = vmul.f32 %v554, 0.6931472
        %v556 = vmul.f32 -0.5, %v503
        %v557 = vadd.f32 %v556, 1.0
        %v558 = vmul.f32 %v557, %v503
        %v559 = vand.u32 2147483647, %v503
        %vm560 = vcmp.lt.f32.partialorder %v559, 0.0004427343
        %v561 = vsel %vm560, %v558, %v555
        %v562 = vadd.f32 %v505, 1.0
        %v563 = vlog2.pop %v562
        %v564 = vmul.f32 %v563, 0.6931472
        %v565 = vmul.f32 -0.5, %v505
        %v566 = vadd.f32 %v565, 1.0
        %v567 = vmul.f32 %v566, %v505
        %v568 = vand.u32 2147483647, %v505
        %vm569 = vcmp.lt.f32.partialorder %v568, 0.0004427343
        %v570 = vsel %vm569, %v567, %v564
        %v571 = vadd.f32 %v507, 1.0
        %v572 = vlog2.pop %v571
        %v573 = vmul.f32 %v572, 0.6931472
        %v574 = vmul.f32 -0.5, %v507
        %v575 = vadd.f32 %v574, 1.0
        %v576 = vmul.f32 %v575, %v507
        %v577 = vand.u32 2147483647, %v507
        %vm578 = vcmp.lt.f32.partialorder %v577, 0.0004427343
        %v579 = vsel %vm578, %v576, %v573
        %v580 = vadd.f32 %v509, 1.0
        %v581 = vlog2.pop %v580
        %v582 = vmul.f32 %v581, 0.6931472
        %v583 = vmul.f32 -0.5, %v509
        %v584 = vadd.f32 %v583, 1.0
        %v585 = vmul.f32 %v584, %v509
        %v586 = vand.u32 2147483647, %v509
        %vm587 = vcmp.lt.f32.partialorder %v586, 0.0004427343
        %v588 = vsel %vm587, %v585, %v582
        %v589 = vadd.f32 %v511, 1.0
        %v590 = vlog2.pop %v589
        %v591 = vmul.f32 %v590, 0.6931472
        %v592 = vmul.f32 -0.5, %v511
        %v593 = vadd.f32 %v592, 1.0
        %v594 = vmul.f32 %v593, %v511
        %v595 = vand.u32 2147483647, %v511
        %vm596 = vcmp.lt.f32.partialorder %v595, 0.0004427343
        %v597 = vsel %vm596, %v594, %v591
        %v598 = vadd.f32 %v513, 1.0
        %v599 = vlog2.pop %v598
        %v600 = vmul.f32 %v599, 0.6931472
        %v601 = vmul.f32 -0.5, %v513
        %v602 = vadd.f32 %v601, 1.0
        %v603 = vmul.f32 %v602, %v513
        %v604 = vand.u32 2147483647, %v513
        %vm605 = vcmp.lt.f32.partialorder %v604, 0.0004427343
        %v606 = vsel %vm605, %v603, %v600
        %v607 = vadd.f32 %v515, 1.0
        %v608 = vlog2.pop %v607
        %v609 = vmul.f32 %v608, 0.6931472
        %v610 = vmul.f32 -0.5, %v515
        %v611 = vadd.f32 %v610, 1.0
        %v612 = vmul.f32 %v611, %v515
        %v613 = vand.u32 2147483647, %v515
        %vm614 = vcmp.lt.f32.partialorder %v613, 0.0004427343
        %v615 = vsel %vm614, %v612, %v609
        %v616 = vadd.f32 %v517, 1.0
        %v617 = vlog2.pop %v616
        %v618 = vmul.f32 %v617, 0.6931472
        %v619 = vmul.f32 -0.5, %v517
        %v620 = vadd.f32 %v619, 1.0
        %v621 = vmul.f32 %v620, %v517
        %v622 = vand.u32 2147483647, %v517
        %vm623 = vcmp.lt.f32.partialorder %v622, 0.0004427343
        %v624 = vsel %vm623, %v621, %v618
        %v625 = vadd.f32 %v519, 1.0
        %v626 = vlog2.pop %v625
        %v627 = vmul.f32 %v626, 0.6931472
        %v628 = vmul.f32 -0.5, %v519
        %v629 = vadd.f32 %v628, 1.0
        %v630 = vmul.f32 %v629, %v519
        %v631 = vand.u32 2147483647, %v519
        %vm632 = vcmp.lt.f32.partialorder %v631, 0.0004427343
        %v633 = vsel %vm632, %v630, %v627
        %v634 = vadd.f32 %v521, 1.0
        %v635 = vlog2.pop %v634
        %v636 = vmul.f32 %v635, 0.6931472
        %v637 = vmul.f32 -0.5, %v521
        %v638 = vadd.f32 %v637, 1.0
        %v639 = vmul.f32 %v638, %v521
        %v640 = vand.u32 2147483647, %v521
        %vm641 = vcmp.lt.f32.partialorder %v640, 0.0004427343
        %v642 = vsel %vm641, %v639, %v636
        %v643 = vadd.f32 %v523, 1.0
        %v644 = vlog2.pop %v643
        %v645 = vmul.f32 %v644, 0.6931472
        %v646 = vmul.f32 -0.5, %v523
        %v647 = vadd.f32 %v646, 1.0
        %v648 = vmul.f32 %v647, %v523
        %v649 = vand.u32 2147483647, %v523
        %vm650 = vcmp.lt.f32.partialorder %v649, 0.0004427343
        %v651 = vsel %vm650, %v648, %v645
        %v652 = vadd.f32 %v525, 1.0
        %v653 = vlog2.pop %v652
        %v654 = vmul.f32 %v653, 0.6931472
        %v655 = vmul.f32 -0.5, %v525
        %v656 = vadd.f32 %v655, 1.0
        %v657 = vmul.f32 %v656, %v525
        %v658 = vand.u32 2147483647, %v525
        %vm659 = vcmp.lt.f32.partialorder %v658, 0.0004427343
        %v660 = vsel %vm659, %v657, %v654
        %v661 = vadd.f32 %v451, %v534
        %v662 = vadd.f32 %v452, %v543
        %v663 = vadd.f32 %v453, %v552
        %v664 = vadd.f32 %v454, %v561
        %v665 = vadd.f32 %v455, %v570
        %v666 = vadd.f32 %v456, %v579
        %v667 = vadd.f32 %v457, %v588
        %v668 = vadd.f32 %v458, %v597
        %v669 = vadd.f32 %v459, %v606
        %v670 = vadd.f32 %v460, %v615
        %v671 = vadd.f32 %v461, %v624
        %v672 = vadd.f32 %v462, %v633
        %v673 = vadd.f32 %v463, %v642
        %v674 = vadd.f32 %v464, %v651
        %v675 = vadd.f32 %v465, %v660
        %v676 = vmul.f32 %v661, 0.01
        %v677 = vmul.f32 %v662, 0.01
        %v678 = vmul.f32 %v663, 0.01
        %v679 = vmul.f32 %v664, 0.01
        %v680 = vmul.f32 %v665, 0.01
        %v681 = vmul.f32 %v666, 0.01
        %v682 = vmul.f32 %v667, 0.01
        %v683 = vmul.f32 %v668, 0.01
        %v684 = vmul.f32 %v669, 0.01
        %v685 = vmul.f32 %v670, 0.01
        %v686 = vmul.f32 %v671, 0.01
        %v687 = vmul.f32 %v672, 0.01
        %v688 = vmul.f32 %v673, 0.01
        %v689 = vmul.f32 %v674, 0.01
        %v690 = vmul.f32 %v675, 0.01
        %v691 = vld [vmem:[%s2] sm:$0xff]
        %v692 = vld [vmem:[%s2 + $0x8] sm:$0xff]
        %v693 = vld [vmem:[%s2 + $0x10] sm:$0xff]
        %v694 = vld [vmem:[%s2 + $0x18] sm:$0xff]
        %v695 = vld [vmem:[%s2 + $0x20] sm:$0xff]
        %v696 = vld [vmem:[%s2 + $0x28] sm:$0xff]
        %v697 = vld [vmem:[%s2 + $0x30] sm:$0xff]
        %v698 = vld [vmem:[%s2 + $0x38] sm:$0xff]
        %v699 = vld [vmem:[%s2 + $0x40] sm:$0xff]
        %v700 = vld [vmem:[%s2 + $0x48] sm:$0xff]
        %v701 = vld [vmem:[%s2 + $0x50] sm:$0xff]
        %v702 = vld [vmem:[%s2 + $0x58] sm:$0xff]
        %v703 = vld [vmem:[%s2 + $0x60] sm:$0xff]
        %v704 = vld [vmem:[%s2 + $0x68] sm:$0xff]
        %v705 = vld [vmem:[%s2 + $0x70] sm:$0xff]
        %v706 = vld [vmem:[%s2 + $0x78] sm:$0xff]
        %s707 = scalar_lea.vmem %s3, 1
        %v708 = vld [vmem:[%s707] sm:$0x1]
        %v710 = vlaneseq
        %v711 = vshrl.u32 %v710, 7
        %v712 = vsub.s32 0, %v711
        %v713 = vrot.slane %v708, %v712
        %715 = vmatprep.subr.mxu0 0.0
        %716 = vmatpush1.msra.mxu0 %v706
        %717 = vmatprep.subr.mxu0 0.0
        %718 = vmatpush1.msra.mxu0 %v705
        %719 = vmatprep.subr.mxu0 0.0
        %720 = vmatpush1.msra.mxu0 %v704
        %721 = vmatprep.subr.mxu0 0.0
        %722 = vmatpush1.msra.mxu0 %v703
        %723 = vmatprep.subr.mxu0 0.0
        %724 = vmatpush1.msra.mxu0 %v702
        %725 = vmatprep.subr.mxu0 0.0
        %726 = vmatpush1.msra.mxu0 %v701
        %727 = vmatprep.subr.mxu0 0.0
        %728 = vmatpush1.msra.mxu0 %v700
        %729 = vmatprep.subr.mxu0 0.0
        %730 = vmatpush1.msra.mxu0 %v699
        %731 = vmatprep.subr.mxu0 0.0
        %732 = vmatpush1.msra.mxu0 %v698
        %733 = vmatprep.subr.mxu0 0.0
        %734 = vmatpush1.msra.mxu0 %v697
        %735 = vmatprep.subr.mxu0 0.0
        %736 = vmatpush1.msra.mxu0 %v696
        %737 = vmatprep.subr.mxu0 0.0
        %738 = vmatpush1.msra.mxu0 %v695
        %739 = vmatprep.subr.mxu0 0.0
        %740 = vmatpush1.msra.mxu0 %v694
        %741 = vmatprep.subr.mxu0 0.0
        %742 = vmatpush1.msra.mxu0 %v693
        %743 = vmatprep.subr.mxu0 0.0
        %744 = vmatpush1.msra.mxu0 %v692
        %745 = vmatprep.subr.mxu0 0.0
        %746 = vmatpush1.msra.mxu0 %v691
        %747 = vmatprep.subr.mxu0 0.0
        %748 = vmatpush2.msra.mxu0 0.0
        %749 = vmatprep.subr.mxu0 0.0
        %750 = vmatpush2.msra.mxu0 0.0
        %751 = vmatprep.subr.mxu0 0.0
        %752 = vmatpush2.msra.mxu0 0.0
        %753 = vmatprep.subr.mxu0 0.0
        %754 = vmatpush2.msra.mxu0 0.0
        %755 = vmatprep.subr.mxu0 0.0
        %756 = vmatpush2.msra.mxu0 0.0
        %757 = vmatprep.subr.mxu0 0.0
        %758 = vmatpush2.msra.mxu0 0.0
        %759 = vmatprep.subr.mxu0 0.0
        %760 = vmatpush2.msra.mxu0 0.0
        %761 = vmatprep.subr.mxu0 0.0
        %762 = vmatpush2.msra.mxu0 0.0
        %763 = vmatprep.subr.mxu0 0.0
        %764 = vmatpush2.msra.mxu0 0.0
        %765 = vmatprep.subr.mxu0 0.0
        %766 = vmatpush2.msra.mxu0 0.0
        %767 = vmatprep.subr.mxu0 0.0
        %768 = vmatpush2.msra.mxu0 0.0
        %769 = vmatprep.subr.mxu0 0.0
        %770 = vmatpush2.msra.mxu0 0.0
        %771 = vmatprep.subr.mxu0 0.0
        %772 = vmatpush2.msra.mxu0 0.0
        %773 = vmatprep.subr.mxu0 0.0
        %774 = vmatpush2.msra.mxu0 0.0
        %775 = vmatprep.subr.mxu0 0.0
        %776 = vmatpush2.msra.mxu0 0.0
        %777 = vmatprep.subr.mxu0 0.0
        %778 = vmatpush2.msra.mxu0 0.0
        %779 = vmatprep.mubr.f32.mxu0 0.0
        %780 = vmatmul.mubr.f32.gmra.mxu0 %v676
        %v781 = vpop.f32.mrf.mxu0
        %v782 = vadd.f32 %v713, %v781
        %v783 = vpop.f32.mrf.mxu0
        %784 = vmatprep.mubr.f32.mxu0 0.0
        %785 = vmatmul.mubr.f32.gmra.mxu0 %v677
        %v786 = vpop.f32.mrf.mxu0
        %v787 = vadd.f32 %v713, %v786
        %v788 = vpop.f32.mrf.mxu0
        %789 = vmatprep.mubr.f32.mxu0 0.0
        %790 = vmatmul.mubr.f32.gmra.mxu0 %v678
        %v791 = vpop.f32.mrf.mxu0
        %v792 = vadd.f32 %v713, %v791
        %v793 = vpop.f32.mrf.mxu0
        %794 = vmatprep.mubr.f32.mxu0 0.0
        %795 = vmatmul.mubr.f32.gmra.mxu0 %v679
        %v796 = vpop.f32.mrf.mxu0
        %v797 = vadd.f32 %v713, %v796
        %v798 = vpop.f32.mrf.mxu0
        %799 = vmatprep.mubr.f32.mxu0 0.0
        %800 = vmatmul.mubr.f32.gmra.mxu0 %v680
        %v801 = vpop.f32.mrf.mxu0
        %v802 = vadd.f32 %v713, %v801
        %v803 = vpop.f32.mrf.mxu0
        %804 = vmatprep.mubr.f32.mxu0 0.0
        %805 = vmatmul.mubr.f32.gmra.mxu0 %v681
        %v806 = vpop.f32.mrf.mxu0
        %v807 = vadd.f32 %v713, %v806
        %v808 = vpop.f32.mrf.mxu0
        %809 = vmatprep.mubr.f32.mxu0 0.0
        %810 = vmatmul.mubr.f32.gmra.mxu0 %v682
        %v811 = vpop.f32.mrf.mxu0
        %v812 = vadd.f32 %v713, %v811
        %v813 = vpop.f32.mrf.mxu0
        %814 = vmatprep.mubr.f32.mxu0 0.0
        %815 = vmatmul.mubr.f32.gmra.mxu0 %v683
        %v816 = vpop.f32.mrf.mxu0
        %v817 = vadd.f32 %v713, %v816
        %v818 = vpop.f32.mrf.mxu0
        %819 = vmatprep.mubr.f32.mxu0 0.0
        %820 = vmatmul.mubr.f32.gmra.mxu0 %v684
        %v821 = vpop.f32.mrf.mxu0
        %v822 = vadd.f32 %v713, %v821
        %v823 = vpop.f32.mrf.mxu0
        %824 = vmatprep.mubr.f32.mxu0 0.0
        %825 = vmatmul.mubr.f32.gmra.mxu0 %v685
        %v826 = vpop.f32.mrf.mxu0
        %v827 = vadd.f32 %v713, %v826
        %v828 = vpop.f32.mrf.mxu0
        %829 = vmatprep.mubr.f32.mxu0 0.0
        %830 = vmatmul.mubr.f32.gmra.mxu0 %v686
        %v831 = vpop.f32.mrf.mxu0
        %v832 = vadd.f32 %v713, %v831
        %v833 = vpop.f32.mrf.mxu0
        %834 = vmatprep.mubr.f32.mxu0 0.0
        %835 = vmatmul.mubr.f32.gmra.mxu0 %v687
        %v836 = vpop.f32.mrf.mxu0
        %v837 = vadd.f32 %v713, %v836
        %v838 = vpop.f32.mrf.mxu0
        %839 = vmatprep.mubr.f32.mxu0 0.0
        %840 = vmatmul.mubr.f32.gmra.mxu0 %v688
        %v841 = vpop.f32.mrf.mxu0
        %v842 = vadd.f32 %v713, %v841
        %v843 = vpop.f32.mrf.mxu0
        %844 = vmatprep.mubr.f32.mxu0 0.0
        %845 = vmatmul.mubr.f32.gmra.mxu0 %v689
        %v846 = vpop.f32.mrf.mxu0
        %v847 = vadd.f32 %v713, %v846
        %v848 = vpop.f32.mrf.mxu0
        %849 = vmatprep.mubr.f32.mxu0 0.0
        %850 = vmatmul.mubr.f32.gmra.mxu0 %v690
        %v851 = vpop.f32.mrf.mxu0
        %v852 = vadd.f32 %v713, %v851
        %v853 = vpop.f32.mrf.mxu0
        %854 = vdwg.mxu0
        %v855 = vmul.f32 %v782, 100.0
        %v856 = vmul.f32 %v787, 100.0
        %v857 = vmul.f32 %v792, 100.0
        %v858 = vmul.f32 %v797, 100.0
        %v859 = vmul.f32 %v802, 100.0
        %v860 = vmul.f32 %v807, 100.0
        %v861 = vmul.f32 %v812, 100.0
        %v862 = vmul.f32 %v817, 100.0
        %v863 = vmul.f32 %v822, 100.0
        %v864 = vmul.f32 %v827, 100.0
        %v865 = vmul.f32 %v832, 100.0
        %v866 = vmul.f32 %v837, 100.0
        %v867 = vmul.f32 %v842, 100.0
        %v868 = vmul.f32 %v847, 100.0
        %v869 = vmul.f32 %v852, 100.0
        %v870 = vmax.f32 %v855, 0.0
        %v871 = vmax.f32 %v856, 0.0
        %v872 = vmax.f32 %v857, 0.0
        %v873 = vmax.f32 %v858, 0.0
        %v874 = vmax.f32 %v859, 0.0
        %v875 = vmax.f32 %v860, 0.0
        %v876 = vmax.f32 %v861, 0.0
        %v877 = vmax.f32 %v862, 0.0
        %v878 = vmax.f32 %v863, 0.0
        %v879 = vmax.f32 %v864, 0.0
        %v880 = vmax.f32 %v865, 0.0
        %v881 = vmax.f32 %v866, 0.0
        %v882 = vmax.f32 %v867, 0.0
        %v883 = vmax.f32 %v868, 0.0
        %v884 = vmax.f32 %v869, 0.0
        %v885 = vand.u32 2147483647, %v855
        %v886 = vand.u32 2147483647, %v856
        %v887 = vand.u32 2147483647, %v857
        %v888 = vand.u32 2147483647, %v858
        %v889 = vand.u32 2147483647, %v859
        %v890 = vand.u32 2147483647, %v860
        %v891 = vand.u32 2147483647, %v861
        %v892 = vand.u32 2147483647, %v862
        %v893 = vand.u32 2147483647, %v863
        %v894 = vand.u32 2147483647, %v864
        %v895 = vand.u32 2147483647, %v865
        %v896 = vand.u32 2147483647, %v866
        %v897 = vand.u32 2147483647, %v867
        %v898 = vand.u32 2147483647, %v868
        %v899 = vand.u32 2147483647, %v869
        %v900 = vsub.f32 0.0, %v885
        %v901 = vsub.f32 0.0, %v886
        %v902 = vsub.f32 0.0, %v887
        %v903 = vsub.f32 0.0, %v888
        %v904 = vsub.f32 0.0, %v889
        %v905 = vsub.f32 0.0, %v890
        %v906 = vsub.f32 0.0, %v891
        %v907 = vsub.f32 0.0, %v892
        %v908 = vsub.f32 0.0, %v893
        %v909 = vsub.f32 0.0, %v894
        %v910 = vsub.f32 0.0, %v895
        %v911 = vsub.f32 0.0, %v896
        %v912 = vsub.f32 0.0, %v897
        %v913 = vsub.f32 0.0, %v898
        %v914 = vsub.f32 0.0, %v899
        %v915 = vmul.f32 %v900, 1.442695
        %v916 = vpow.pop %v915
        %v917 = vmul.f32 %v901, 1.442695
        %v918 = vpow.pop %v917
        %v919 = vmul.f32 %v902, 1.442695
        %v920 = vpow.pop %v919
        %v921 = vmul.f32 %v903, 1.442695
        %v922 = vpow.pop %v921
        %v923 = vmul.f32 %v904, 1.442695
        %v924 = vpow.pop %v923
        %v925 = vmul.f32 %v905, 1.442695
        %v926 = vpow.pop %v925
        %v927 = vmul.f32 %v906, 1.442695
        %v928 = vpow.pop %v927
        %v929 = vmul.f32 %v907, 1.442695
        %v930 = vpow.pop %v929
        %v931 = vmul.f32 %v908, 1.442695
        %v932 = vpow.pop %v931
        %v933 = vmul.f32 %v909, 1.442695
        %v934 = vpow.pop %v933
        %v935 = vmul.f32 %v910, 1.442695
        %v936 = vpow.pop %v935
        %v937 = vmul.f32 %v911, 1.442695
        %v938 = vpow.pop %v937
        %v939 = vmul.f32 %v912, 1.442695
        %v940 = vpow.pop %v939
        %v941 = vmul.f32 %v913, 1.442695
        %v942 = vpow.pop %v941
        %v943 = vmul.f32 %v914, 1.442695
        %v944 = vpow.pop %v943
        %v945 = vadd.f32 %v916, 1.0
        %v946 = vlog2.pop %v945
        %v947 = vmul.f32 %v946, 0.6931472
        %v948 = vmul.f32 -0.5, %v916
        %v949 = vadd.f32 %v948, 1.0
        %v950 = vmul.f32 %v949, %v916
        %v951 = vand.u32 2147483647, %v916
        %vm952 = vcmp.lt.f32.partialorder %v951, 0.0004427343
        %v953 = vsel %vm952, %v950, %v947
        %v954 = vadd.f32 %v918, 1.0
        %v955 = vlog2.pop %v954
        %v956 = vmul.f32 %v955, 0.6931472
        %v957 = vmul.f32 -0.5, %v918
        %v958 = vadd.f32 %v957, 1.0
        %v959 = vmul.f32 %v958, %v918
        %v960 = vand.u32 2147483647, %v918
        %vm961 = vcmp.lt.f32.partialorder %v960, 0.0004427343
        %v962 = vsel %vm961, %v959, %v956
        %v963 = vadd.f32 %v920, 1.0
        %v964 = vlog2.pop %v963
        %v965 = vmul.f32 %v964, 0.6931472
        %v966 = vmul.f32 -0.5, %v920
        %v967 = vadd.f32 %v966, 1.0
        %v968 = vmul.f32 %v967, %v920
        %v969 = vand.u32 2147483647, %v920
        %vm970 = vcmp.lt.f32.partialorder %v969, 0.0004427343
        %v971 = vsel %vm970, %v968, %v965
        %v972 = vadd.f32 %v922, 1.0
        %v973 = vlog2.pop %v972
        %v974 = vmul.f32 %v973, 0.6931472
        %v975 = vmul.f32 -0.5, %v922
        %v976 = vadd.f32 %v975, 1.0
        %v977 = vmul.f32 %v976, %v922
        %v978 = vand.u32 2147483647, %v922
        %vm979 = vcmp.lt.f32.partialorder %v978, 0.0004427343
        %v980 = vsel %vm979, %v977, %v974
        %v981 = vadd.f32 %v924, 1.0
        %v982 = vlog2.pop %v981
        %v983 = vmul.f32 %v982, 0.6931472
        %v984 = vmul.f32 -0.5, %v924
        %v985 = vadd.f32 %v984, 1.0
        %v986 = vmul.f32 %v985, %v924
        %v987 = vand.u32 2147483647, %v924
        %vm988 = vcmp.lt.f32.partialorder %v987, 0.0004427343
        %v989 = vsel %vm988, %v986, %v983
        %v990 = vadd.f32 %v926, 1.0
        %v991 = vlog2.pop %v990
        %v992 = vmul.f32 %v991, 0.6931472
        %v993 = vmul.f32 -0.5, %v926
        %v994 = vadd.f32 %v993, 1.0
        %v995 = vmul.f32 %v994, %v926
        %v996 = vand.u32 2147483647, %v926
        %vm997 = vcmp.lt.f32.partialorder %v996, 0.0004427343
        %v998 = vsel %vm997, %v995, %v992
        %v999 = vadd.f32 %v928, 1.0
        %v1000 = vlog2.pop %v999
        %v1001 = vmul.f32 %v1000, 0.6931472
        %v1002 = vmul.f32 -0.5, %v928
        %v1003 = vadd.f32 %v1002, 1.0
        %v1004 = vmul.f32 %v1003, %v928
        %v1005 = vand.u32 2147483647, %v928
        %vm1006 = vcmp.lt.f32.partialorder %v1005, 0.0004427343
        %v1007 = vsel %vm1006, %v1004, %v1001
        %v1008 = vadd.f32 %v930, 1.0
        %v1009 = vlog2.pop %v1008
        %v1010 = vmul.f32 %v1009, 0.6931472
        %v1011 = vmul.f32 -0.5, %v930
        %v1012 = vadd.f32 %v1011, 1.0
        %v1013 = vmul.f32 %v1012, %v930
        %v1014 = vand.u32 2147483647, %v930
        %vm1015 = vcmp.lt.f32.partialorder %v1014, 0.0004427343
        %v1016 = vsel %vm1015, %v1013, %v1010
        %v1017 = vadd.f32 %v932, 1.0
        %v1018 = vlog2.pop %v1017
        %v1019 = vmul.f32 %v1018, 0.6931472
        %v1020 = vmul.f32 -0.5, %v932
        %v1021 = vadd.f32 %v1020, 1.0
        %v1022 = vmul.f32 %v1021, %v932
        %v1023 = vand.u32 2147483647, %v932
        %vm1024 = vcmp.lt.f32.partialorder %v1023, 0.0004427343
        %v1025 = vsel %vm1024, %v1022, %v1019
        %v1026 = vadd.f32 %v934, 1.0
        %v1027 = vlog2.pop %v1026
        %v1028 = vmul.f32 %v1027, 0.6931472
        %v1029 = vmul.f32 -0.5, %v934
        %v1030 = vadd.f32 %v1029, 1.0
        %v1031 = vmul.f32 %v1030, %v934
        %v1032 = vand.u32 2147483647, %v934
        %vm1033 = vcmp.lt.f32.partialorder %v1032, 0.0004427343
        %v1034 = vsel %vm1033, %v1031, %v1028
        %v1035 = vadd.f32 %v936, 1.0
        %v1036 = vlog2.pop %v1035
        %v1037 = vmul.f32 %v1036, 0.6931472
        %v1038 = vmul.f32 -0.5, %v936
        %v1039 = vadd.f32 %v1038, 1.0
        %v1040 = vmul.f32 %v1039, %v936
        %v1041 = vand.u32 2147483647, %v936
        %vm1042 = vcmp.lt.f32.partialorder %v1041, 0.0004427343
        %v1043 = vsel %vm1042, %v1040, %v1037
        %v1044 = vadd.f32 %v938, 1.0
        %v1045 = vlog2.pop %v1044
        %v1046 = vmul.f32 %v1045, 0.6931472
        %v1047 = vmul.f32 -0.5, %v938
        %v1048 = vadd.f32 %v1047, 1.0
        %v1049 = vmul.f32 %v1048, %v938
        %v1050 = vand.u32 2147483647, %v938
        %vm1051 = vcmp.lt.f32.partialorder %v1050, 0.0004427343
        %v1052 = vsel %vm1051, %v1049, %v1046
        %v1053 = vadd.f32 %v940, 1.0
        %v1054 = vlog2.pop %v1053
        %v1055 = vmul.f32 %v1054, 0.6931472
        %v1056 = vmul.f32 -0.5, %v940
        %v1057 = vadd.f32 %v1056, 1.0
        %v1058 = vmul.f32 %v1057, %v940
        %v1059 = vand.u32 2147483647, %v940
        %vm1060 = vcmp.lt.f32.partialorder %v1059, 0.0004427343
        %v1061 = vsel %vm1060, %v1058, %v1055
        %v1062 = vadd.f32 %v942, 1.0
        %v1063 = vlog2.pop %v1062
        %v1064 = vmul.f32 %v1063, 0.6931472
        %v1065 = vmul.f32 -0.5, %v942
        %v1066 = vadd.f32 %v1065, 1.0
        %v1067 = vmul.f32 %v1066, %v942
        %v1068 = vand.u32 2147483647, %v942
        %vm1069 = vcmp.lt.f32.partialorder %v1068, 0.0004427343
        %v1070 = vsel %vm1069, %v1067, %v1064
        %v1071 = vadd.f32 %v944, 1.0
        %v1072 = vlog2.pop %v1071
        %v1073 = vmul.f32 %v1072, 0.6931472
        %v1074 = vmul.f32 -0.5, %v944
        %v1075 = vadd.f32 %v1074, 1.0
        %v1076 = vmul.f32 %v1075, %v944
        %v1077 = vand.u32 2147483647, %v944
        %vm1078 = vcmp.lt.f32.partialorder %v1077, 0.0004427343
        %v1079 = vsel %vm1078, %v1076, %v1073
        %v1080 = vadd.f32 %v870, %v953
        %v1081 = vadd.f32 %v871, %v962
        %v1082 = vadd.f32 %v872, %v971
        %v1083 = vadd.f32 %v873, %v980
        %v1084 = vadd.f32 %v874, %v989
        %v1085 = vadd.f32 %v875, %v998
        %v1086 = vadd.f32 %v876, %v1007
        %v1087 = vadd.f32 %v877, %v1016
        %v1088 = vadd.f32 %v878, %v1025
        %v1089 = vadd.f32 %v879, %v1034
        %v1090 = vadd.f32 %v880, %v1043
        %v1091 = vadd.f32 %v881, %v1052
        %v1092 = vadd.f32 %v882, %v1061
        %v1093 = vadd.f32 %v883, %v1070
        %v1094 = vadd.f32 %v884, %v1079
        %v1095 = vmul.f32 %v1080, 0.01
        %v1096 = vmul.f32 %v1081, 0.01
        %v1097 = vmul.f32 %v1082, 0.01
        %v1098 = vmul.f32 %v1083, 0.01
        %v1099 = vmul.f32 %v1084, 0.01
        %v1100 = vmul.f32 %v1085, 0.01
        %v1101 = vmul.f32 %v1086, 0.01
        %v1102 = vmul.f32 %v1087, 0.01
        %v1103 = vmul.f32 %v1088, 0.01
        %v1104 = vmul.f32 %v1089, 0.01
        %v1105 = vmul.f32 %v1090, 0.01
        %v1106 = vmul.f32 %v1091, 0.01
        %v1107 = vmul.f32 %v1092, 0.01
        %v1108 = vmul.f32 %v1093, 0.01
        %v1109 = vmul.f32 %v1094, 0.01
        %s1110 = scalar_lea.vmem %s2, 128
        %v1111 = vld [vmem:[%s1110] sm:$0xff]
        %v1112 = vld [vmem:[%s1110 + $0x8] sm:$0xff]
        %v1113 = vld [vmem:[%s1110 + $0x10] sm:$0xff]
        %v1114 = vld [vmem:[%s1110 + $0x18] sm:$0xff]
        %v1115 = vld [vmem:[%s1110 + $0x20] sm:$0xff]
        %v1116 = vld [vmem:[%s1110 + $0x28] sm:$0xff]
        %v1117 = vld [vmem:[%s1110 + $0x30] sm:$0xff]
        %v1118 = vld [vmem:[%s1110 + $0x38] sm:$0xff]
        %v1119 = vld [vmem:[%s1110 + $0x40] sm:$0xff]
        %v1120 = vld [vmem:[%s1110 + $0x48] sm:$0xff]
        %v1121 = vld [vmem:[%s1110 + $0x50] sm:$0xff]
        %v1122 = vld [vmem:[%s1110 + $0x58] sm:$0xff]
        %v1123 = vld [vmem:[%s1110 + $0x60] sm:$0xff]
        %v1124 = vld [vmem:[%s1110 + $0x68] sm:$0xff]
        %v1125 = vld [vmem:[%s1110 + $0x70] sm:$0xff]
        %v1126 = vld [vmem:[%s1110 + $0x78] sm:$0xff]
        %s1127 = scalar_lea.vmem %s3, 2
        %v1128 = vld [vmem:[%s1127] sm:$0x1]
        %v1130 = vlaneseq
        %v1131 = vshrl.u32 %v1130, 7
        %v1132 = vsub.s32 0, %v1131
        %v1133 = vrot.slane %v1128, %v1132
        %1135 = vmatprep.subr.mxu0 0.0
        %1136 = vmatpush1.msra.mxu0 %v1126
        %1137 = vmatprep.subr.mxu0 0.0
        %1138 = vmatpush1.msra.mxu0 %v1125
        %1139 = vmatprep.subr.mxu0 0.0
        %1140 = vmatpush1.msra.mxu0 %v1124
        %1141 = vmatprep.subr.mxu0 0.0
        %1142 = vmatpush1.msra.mxu0 %v1123
        %1143 = vmatprep.subr.mxu0 0.0
        %1144 = vmatpush1.msra.mxu0 %v1122
        %1145 = vmatprep.subr.mxu0 0.0
        %1146 = vmatpush1.msra.mxu0 %v1121
        %1147 = vmatprep.subr.mxu0 0.0
        %1148 = vmatpush1.msra.mxu0 %v1120
        %1149 = vmatprep.subr.mxu0 0.0
        %1150 = vmatpush1.msra.mxu0 %v1119
        %1151 = vmatprep.subr.mxu0 0.0
        %1152 = vmatpush1.msra.mxu0 %v1118
        %1153 = vmatprep.subr.mxu0 0.0
        %1154 = vmatpush1.msra.mxu0 %v1117
        %1155 = vmatprep.subr.mxu0 0.0
        %1156 = vmatpush1.msra.mxu0 %v1116
        %1157 = vmatprep.subr.mxu0 0.0
        %1158 = vmatpush1.msra.mxu0 %v1115
        %1159 = vmatprep.subr.mxu0 0.0
        %1160 = vmatpush1.msra.mxu0 %v1114
        %1161 = vmatprep.subr.mxu0 0.0
        %1162 = vmatpush1.msra.mxu0 %v1113
        %1163 = vmatprep.subr.mxu0 0.0
        %1164 = vmatpush1.msra.mxu0 %v1112
        %1165 = vmatprep.subr.mxu0 0.0
        %1166 = vmatpush1.msra.mxu0 %v1111
        %1167 = vmatprep.subr.mxu0 0.0
        %1168 = vmatpush2.msra.mxu0 0.0
        %1169 = vmatprep.subr.mxu0 0.0
        %1170 = vmatpush2.msra.mxu0 0.0
        %1171 = vmatprep.subr.mxu0 0.0
        %1172 = vmatpush2.msra.mxu0 0.0
        %1173 = vmatprep.subr.mxu0 0.0
        %1174 = vmatpush2.msra.mxu0 0.0
        %1175 = vmatprep.subr.mxu0 0.0
        %1176 = vmatpush2.msra.mxu0 0.0
        %1177 = vmatprep.subr.mxu0 0.0
        %1178 = vmatpush2.msra.mxu0 0.0
        %1179 = vmatprep.subr.mxu0 0.0
        %1180 = vmatpush2.msra.mxu0 0.0
        %1181 = vmatprep.subr.mxu0 0.0
        %1182 = vmatpush2.msra.mxu0 0.0
        %1183 = vmatprep.subr.mxu0 0.0
        %1184 = vmatpush2.msra.mxu0 0.0
        %1185 = vmatprep.subr.mxu0 0.0
        %1186 = vmatpush2.msra.mxu0 0.0
        %1187 = vmatprep.subr.mxu0 0.0
        %1188 = vmatpush2.msra.mxu0 0.0
        %1189 = vmatprep.subr.mxu0 0.0
        %1190 = vmatpush2.msra.mxu0 0.0
        %1191 = vmatprep.subr.mxu0 0.0
        %1192 = vmatpush2.msra.mxu0 0.0
        %1193 = vmatprep.subr.mxu0 0.0
        %1194 = vmatpush2.msra.mxu0 0.0
        %1195 = vmatprep.subr.mxu0 0.0
        %1196 = vmatpush2.msra.mxu0 0.0
        %1197 = vmatprep.subr.mxu0 0.0
        %1198 = vmatpush2.msra.mxu0 0.0
        %1199 = vmatprep.mubr.f32.mxu0 0.0
        %1200 = vmatmul.mubr.f32.gmra.mxu0 %v1095
        %v1201 = vpop.f32.mrf.mxu0
        %v1202 = vadd.f32 %v1133, %v1201
        %v1203 = vpop.f32.mrf.mxu0
        %1204 = vmatprep.mubr.f32.mxu0 0.0
        %1205 = vmatmul.mubr.f32.gmra.mxu0 %v1096
        %v1206 = vpop.f32.mrf.mxu0
        %v1207 = vadd.f32 %v1133, %v1206
        %v1208 = vpop.f32.mrf.mxu0
        %1209 = vmatprep.mubr.f32.mxu0 0.0
        %1210 = vmatmul.mubr.f32.gmra.mxu0 %v1097
        %v1211 = vpop.f32.mrf.mxu0
        %v1212 = vadd.f32 %v1133, %v1211
        %v1213 = vpop.f32.mrf.mxu0
        %1214 = vmatprep.mubr.f32.mxu0 0.0
        %1215 = vmatmul.mubr.f32.gmra.mxu0 %v1098
        %v1216 = vpop.f32.mrf.mxu0
        %v1217 = vadd.f32 %v1133, %v1216
        %v1218 = vpop.f32.mrf.mxu0
        %1219 = vmatprep.mubr.f32.mxu0 0.0
        %1220 = vmatmul.mubr.f32.gmra.mxu0 %v1099
        %v1221 = vpop.f32.mrf.mxu0
        %v1222 = vadd.f32 %v1133, %v1221
        %v1223 = vpop.f32.mrf.mxu0
        %1224 = vmatprep.mubr.f32.mxu0 0.0
        %1225 = vmatmul.mubr.f32.gmra.mxu0 %v1100
        %v1226 = vpop.f32.mrf.mxu0
        %v1227 = vadd.f32 %v1133, %v1226
        %v1228 = vpop.f32.mrf.mxu0
        %1229 = vmatprep.mubr.f32.mxu0 0.0
        %1230 = vmatmul.mubr.f32.gmra.mxu0 %v1101
        %v1231 = vpop.f32.mrf.mxu0
        %v1232 = vadd.f32 %v1133, %v1231
        %v1233 = vpop.f32.mrf.mxu0
        %1234 = vmatprep.mubr.f32.mxu0 0.0
        %1235 = vmatmul.mubr.f32.gmra.mxu0 %v1102
        %v1236 = vpop.f32.mrf.mxu0
        %v1237 = vadd.f32 %v1133, %v1236
        %v1238 = vpop.f32.mrf.mxu0
        %1239 = vmatprep.mubr.f32.mxu0 0.0
        %1240 = vmatmul.mubr.f32.gmra.mxu0 %v1103
        %v1241 = vpop.f32.mrf.mxu0
        %v1242 = vadd.f32 %v1133, %v1241
        %v1243 = vpop.f32.mrf.mxu0
        %1244 = vmatprep.mubr.f32.mxu0 0.0
        %1245 = vmatmul.mubr.f32.gmra.mxu0 %v1104
        %v1246 = vpop.f32.mrf.mxu0
        %v1247 = vadd.f32 %v1133, %v1246
        %v1248 = vpop.f32.mrf.mxu0
        %1249 = vmatprep.mubr.f32.mxu0 0.0
        %1250 = vmatmul.mubr.f32.gmra.mxu0 %v1105
        %v1251 = vpop.f32.mrf.mxu0
        %v1252 = vadd.f32 %v1133, %v1251
        %v1253 = vpop.f32.mrf.mxu0
        %1254 = vmatprep.mubr.f32.mxu0 0.0
        %1255 = vmatmul.mubr.f32.gmra.mxu0 %v1106
        %v1256 = vpop.f32.mrf.mxu0
        %v1257 = vadd.f32 %v1133, %v1256
        %v1258 = vpop.f32.mrf.mxu0
        %1259 = vmatprep.mubr.f32.mxu0 0.0
        %1260 = vmatmul.mubr.f32.gmra.mxu0 %v1107
        %v1261 = vpop.f32.mrf.mxu0
        %v1262 = vadd.f32 %v1133, %v1261
        %v1263 = vpop.f32.mrf.mxu0
        %1264 = vmatprep.mubr.f32.mxu0 0.0
        %1265 = vmatmul.mubr.f32.gmra.mxu0 %v1108
        %v1266 = vpop.f32.mrf.mxu0
        %v1267 = vadd.f32 %v1133, %v1266
        %v1268 = vpop.f32.mrf.mxu0
        %1269 = vmatprep.mubr.f32.mxu0 0.0
        %1270 = vmatmul.mubr.f32.gmra.mxu0 %v1109
        %v1271 = vpop.f32.mrf.mxu0
        %v1272 = vadd.f32 %v1133, %v1271
        %v1273 = vpop.f32.mrf.mxu0
        %1274 = vdwg.mxu0
        %v1275 = vmul.f32 %v1202, 100.0
        %v1276 = vmul.f32 %v1207, 100.0
        %v1277 = vmul.f32 %v1212, 100.0
        %v1278 = vmul.f32 %v1217, 100.0
        %v1279 = vmul.f32 %v1222, 100.0
        %v1280 = vmul.f32 %v1227, 100.0
        %v1281 = vmul.f32 %v1232, 100.0
        %v1282 = vmul.f32 %v1237, 100.0
        %v1283 = vmul.f32 %v1242, 100.0
        %v1284 = vmul.f32 %v1247, 100.0
        %v1285 = vmul.f32 %v1252, 100.0
        %v1286 = vmul.f32 %v1257, 100.0
        %v1287 = vmul.f32 %v1262, 100.0
        %v1288 = vmul.f32 %v1267, 100.0
        %v1289 = vmul.f32 %v1272, 100.0
        %v1290 = vmax.f32 %v1275, 0.0
        %v1291 = vmax.f32 %v1276, 0.0
        %v1292 = vmax.f32 %v1277, 0.0
        %v1293 = vmax.f32 %v1278, 0.0
        %v1294 = vmax.f32 %v1279, 0.0
        %v1295 = vmax.f32 %v1280, 0.0
        %v1296 = vmax.f32 %v1281, 0.0
        %v1297 = vmax.f32 %v1282, 0.0
        %v1298 = vmax.f32 %v1283, 0.0
        %v1299 = vmax.f32 %v1284, 0.0
        %v1300 = vmax.f32 %v1285, 0.0
        %v1301 = vmax.f32 %v1286, 0.0
        %v1302 = vmax.f32 %v1287, 0.0
        %v1303 = vmax.f32 %v1288, 0.0
        %v1304 = vmax.f32 %v1289, 0.0
        %v1305 = vand.u32 2147483647, %v1275
        %v1306 = vand.u32 2147483647, %v1276
        %v1307 = vand.u32 2147483647, %v1277
        %v1308 = vand.u32 2147483647, %v1278
        %v1309 = vand.u32 2147483647, %v1279
        %v1310 = vand.u32 2147483647, %v1280
        %v1311 = vand.u32 2147483647, %v1281
        %v1312 = vand.u32 2147483647, %v1282
        %v1313 = vand.u32 2147483647, %v1283
        %v1314 = vand.u32 2147483647, %v1284
        %v1315 = vand.u32 2147483647, %v1285
        %v1316 = vand.u32 2147483647, %v1286
        %v1317 = vand.u32 2147483647, %v1287
        %v1318 = vand.u32 2147483647, %v1288
        %v1319 = vand.u32 2147483647, %v1289
        %v1320 = vsub.f32 0.0, %v1305
        %v1321 = vsub.f32 0.0, %v1306
        %v1322 = vsub.f32 0.0, %v1307
        %v1323 = vsub.f32 0.0, %v1308
        %v1324 = vsub.f32 0.0, %v1309
        %v1325 = vsub.f32 0.0, %v1310
        %v1326 = vsub.f32 0.0, %v1311
        %v1327 = vsub.f32 0.0, %v1312
        %v1328 = vsub.f32 0.0, %v1313
        %v1329 = vsub.f32 0.0, %v1314
        %v1330 = vsub.f32 0.0, %v1315
        %v1331 = vsub.f32 0.0, %v1316
        %v1332 = vsub.f32 0.0, %v1317
        %v1333 = vsub.f32 0.0, %v1318
        %v1334 = vsub.f32 0.0, %v1319
        %v1335 = vmul.f32 %v1320, 1.442695
        %v1336 = vpow.pop %v1335
        %v1337 = vmul.f32 %v1321, 1.442695
        %v1338 = vpow.pop %v1337
        %v1339 = vmul.f32 %v1322, 1.442695
        %v1340 = vpow.pop %v1339
        %v1341 = vmul.f32 %v1323, 1.442695
        %v1342 = vpow.pop %v1341
        %v1343 = vmul.f32 %v1324, 1.442695
        %v1344 = vpow.pop %v1343
        %v1345 = vmul.f32 %v1325, 1.442695
        %v1346 = vpow.pop %v1345
        %v1347 = vmul.f32 %v1326, 1.442695
        %v1348 = vpow.pop %v1347
        %v1349 = vmul.f32 %v1327, 1.442695
        %v1350 = vpow.pop %v1349
        %v1351 = vmul.f32 %v1328, 1.442695
        %v1352 = vpow.pop %v1351
        %v1353 = vmul.f32 %v1329, 1.442695
        %v1354 = vpow.pop %v1353
        %v1355 = vmul.f32 %v1330, 1.442695
        %v1356 = vpow.pop %v1355
        %v1357 = vmul.f32 %v1331, 1.442695
        %v1358 = vpow.pop %v1357
        %v1359 = vmul.f32 %v1332, 1.442695
        %v1360 = vpow.pop %v1359
        %v1361 = vmul.f32 %v1333, 1.442695
        %v1362 = vpow.pop %v1361
        %v1363 = vmul.f32 %v1334, 1.442695
        %v1364 = vpow.pop %v1363
        %v1365 = vadd.f32 %v1336, 1.0
        %v1366 = vlog2.pop %v1365
        %v1367 = vmul.f32 %v1366, 0.6931472
        %v1368 = vmul.f32 -0.5, %v1336
        %v1369 = vadd.f32 %v1368, 1.0
        %v1370 = vmul.f32 %v1369, %v1336
        %v1371 = vand.u32 2147483647, %v1336
        %vm1372 = vcmp.lt.f32.partialorder %v1371, 0.0004427343
        %v1373 = vsel %vm1372, %v1370, %v1367
        %v1374 = vadd.f32 %v1338, 1.0
        %v1375 = vlog2.pop %v1374
        %v1376 = vmul.f32 %v1375, 0.6931472
        %v1377 = vmul.f32 -0.5, %v1338
        %v1378 = vadd.f32 %v1377, 1.0
        %v1379 = vmul.f32 %v1378, %v1338
        %v1380 = vand.u32 2147483647, %v1338
        %vm1381 = vcmp.lt.f32.partialorder %v1380, 0.0004427343
        %v1382 = vsel %vm1381, %v1379, %v1376
        %v1383 = vadd.f32 %v1340, 1.0
        %v1384 = vlog2.pop %v1383
        %v1385 = vmul.f32 %v1384, 0.6931472
        %v1386 = vmul.f32 -0.5, %v1340
        %v1387 = vadd.f32 %v1386, 1.0
        %v1388 = vmul.f32 %v1387, %v1340
        %v1389 = vand.u32 2147483647, %v1340
        %vm1390 = vcmp.lt.f32.partialorder %v1389, 0.0004427343
        %v1391 = vsel %vm1390, %v1388, %v1385
        %v1392 = vadd.f32 %v1342, 1.0
        %v1393 = vlog2.pop %v1392
        %v1394 = vmul.f32 %v1393, 0.6931472
        %v1395 = vmul.f32 -0.5, %v1342
        %v1396 = vadd.f32 %v1395, 1.0
        %v1397 = vmul.f32 %v1396, %v1342
        %v1398 = vand.u32 2147483647, %v1342
        %vm1399 = vcmp.lt.f32.partialorder %v1398, 0.0004427343
        %v1400 = vsel %vm1399, %v1397, %v1394
        %v1401 = vadd.f32 %v1344, 1.0
        %v1402 = vlog2.pop %v1401
        %v1403 = vmul.f32 %v1402, 0.6931472
        %v1404 = vmul.f32 -0.5, %v1344
        %v1405 = vadd.f32 %v1404, 1.0
        %v1406 = vmul.f32 %v1405, %v1344
        %v1407 = vand.u32 2147483647, %v1344
        %vm1408 = vcmp.lt.f32.partialorder %v1407, 0.0004427343
        %v1409 = vsel %vm1408, %v1406, %v1403
        %v1410 = vadd.f32 %v1346, 1.0
        %v1411 = vlog2.pop %v1410
        %v1412 = vmul.f32 %v1411, 0.6931472
        %v1413 = vmul.f32 -0.5, %v1346
        %v1414 = vadd.f32 %v1413, 1.0
        %v1415 = vmul.f32 %v1414, %v1346
        %v1416 = vand.u32 2147483647, %v1346
        %vm1417 = vcmp.lt.f32.partialorder %v1416, 0.0004427343
        %v1418 = vsel %vm1417, %v1415, %v1412
        %v1419 = vadd.f32 %v1348, 1.0
        %v1420 = vlog2.pop %v1419
        %v1421 = vmul.f32 %v1420, 0.6931472
        %v1422 = vmul.f32 -0.5, %v1348
        %v1423 = vadd.f32 %v1422, 1.0
        %v1424 = vmul.f32 %v1423, %v1348
        %v1425 = vand.u32 2147483647, %v1348
        %vm1426 = vcmp.lt.f32.partialorder %v1425, 0.0004427343
        %v1427 = vsel %vm1426, %v1424, %v1421
        %v1428 = vadd.f32 %v1350, 1.0
        %v1429 = vlog2.pop %v1428
        %v1430 = vmul.f32 %v1429, 0.6931472
        %v1431 = vmul.f32 -0.5, %v1350
        %v1432 = vadd.f32 %v1431, 1.0
        %v1433 = vmul.f32 %v1432, %v1350
        %v1434 = vand.u32 2147483647, %v1350
        %vm1435 = vcmp.lt.f32.partialorder %v1434, 0.0004427343
        %v1436 = vsel %vm1435, %v1433, %v1430
        %v1437 = vadd.f32 %v1352, 1.0
        %v1438 = vlog2.pop %v1437
        %v1439 = vmul.f32 %v1438, 0.6931472
        %v1440 = vmul.f32 -0.5, %v1352
        %v1441 = vadd.f32 %v1440, 1.0
        %v1442 = vmul.f32 %v1441, %v1352
        %v1443 = vand.u32 2147483647, %v1352
        %vm1444 = vcmp.lt.f32.partialorder %v1443, 0.0004427343
        %v1445 = vsel %vm1444, %v1442, %v1439
        %v1446 = vadd.f32 %v1354, 1.0
        %v1447 = vlog2.pop %v1446
        %v1448 = vmul.f32 %v1447, 0.6931472
        %v1449 = vmul.f32 -0.5, %v1354
        %v1450 = vadd.f32 %v1449, 1.0
        %v1451 = vmul.f32 %v1450, %v1354
        %v1452 = vand.u32 2147483647, %v1354
        %vm1453 = vcmp.lt.f32.partialorder %v1452, 0.0004427343
        %v1454 = vsel %vm1453, %v1451, %v1448
        %v1455 = vadd.f32 %v1356, 1.0
        %v1456 = vlog2.pop %v1455
        %v1457 = vmul.f32 %v1456, 0.6931472
        %v1458 = vmul.f32 -0.5, %v1356
        %v1459 = vadd.f32 %v1458, 1.0
        %v1460 = vmul.f32 %v1459, %v1356
        %v1461 = vand.u32 2147483647, %v1356
        %vm1462 = vcmp.lt.f32.partialorder %v1461, 0.0004427343
        %v1463 = vsel %vm1462, %v1460, %v1457
        %v1464 = vadd.f32 %v1358, 1.0
        %v1465 = vlog2.pop %v1464
        %v1466 = vmul.f32 %v1465, 0.6931472
        %v1467 = vmul.f32 -0.5, %v1358
        %v1468 = vadd.f32 %v1467, 1.0
        %v1469 = vmul.f32 %v1468, %v1358
        %v1470 = vand.u32 2147483647, %v1358
        %vm1471 = vcmp.lt.f32.partialorder %v1470, 0.0004427343
        %v1472 = vsel %vm1471, %v1469, %v1466
        %v1473 = vadd.f32 %v1360, 1.0
        %v1474 = vlog2.pop %v1473
        %v1475 = vmul.f32 %v1474, 0.6931472
        %v1476 = vmul.f32 -0.5, %v1360
        %v1477 = vadd.f32 %v1476, 1.0
        %v1478 = vmul.f32 %v1477, %v1360
        %v1479 = vand.u32 2147483647, %v1360
        %vm1480 = vcmp.lt.f32.partialorder %v1479, 0.0004427343
        %v1481 = vsel %vm1480, %v1478, %v1475
        %v1482 = vadd.f32 %v1362, 1.0
        %v1483 = vlog2.pop %v1482
        %v1484 = vmul.f32 %v1483, 0.6931472
        %v1485 = vmul.f32 -0.5, %v1362
        %v1486 = vadd.f32 %v1485, 1.0
        %v1487 = vmul.f32 %v1486, %v1362
        %v1488 = vand.u32 2147483647, %v1362
        %vm1489 = vcmp.lt.f32.partialorder %v1488, 0.0004427343
        %v1490 = vsel %vm1489, %v1487, %v1484
        %v1491 = vadd.f32 %v1364, 1.0
        %v1492 = vlog2.pop %v1491
        %v1493 = vmul.f32 %v1492, 0.6931472
        %v1494 = vmul.f32 -0.5, %v1364
        %v1495 = vadd.f32 %v1494, 1.0
        %v1496 = vmul.f32 %v1495, %v1364
        %v1497 = vand.u32 2147483647, %v1364
        %vm1498 = vcmp.lt.f32.partialorder %v1497, 0.0004427343
        %v1499 = vsel %vm1498, %v1496, %v1493
        %v1500 = vadd.f32 %v1290, %v1373
        %v1501 = vadd.f32 %v1291, %v1382
        %v1502 = vadd.f32 %v1292, %v1391
        %v1503 = vadd.f32 %v1293, %v1400
        %v1504 = vadd.f32 %v1294, %v1409
        %v1505 = vadd.f32 %v1295, %v1418
        %v1506 = vadd.f32 %v1296, %v1427
        %v1507 = vadd.f32 %v1297, %v1436
        %v1508 = vadd.f32 %v1298, %v1445
        %v1509 = vadd.f32 %v1299, %v1454
        %v1510 = vadd.f32 %v1300, %v1463
        %v1511 = vadd.f32 %v1301, %v1472
        %v1512 = vadd.f32 %v1302, %v1481
        %v1513 = vadd.f32 %v1303, %v1490
        %v1514 = vadd.f32 %v1304, %v1499
        %v1515 = vmul.f32 %v1500, 0.01
        %v1516 = vmul.f32 %v1501, 0.01
        %v1517 = vmul.f32 %v1502, 0.01
        %v1518 = vmul.f32 %v1503, 0.01
        %v1519 = vmul.f32 %v1504, 0.01
        %v1520 = vmul.f32 %v1505, 0.01
        %v1521 = vmul.f32 %v1506, 0.01
        %v1522 = vmul.f32 %v1507, 0.01
        %v1523 = vmul.f32 %v1508, 0.01
        %v1524 = vmul.f32 %v1509, 0.01
        %v1525 = vmul.f32 %v1510, 0.01
        %v1526 = vmul.f32 %v1511, 0.01
        %v1527 = vmul.f32 %v1512, 0.01
        %v1528 = vmul.f32 %v1513, 0.01
        %v1529 = vmul.f32 %v1514, 0.01
        %s1530 = scalar_lea.vmem %s2, 256
        %v1531 = vld [vmem:[%s1530] sm:$0xff]
        %v1532 = vld [vmem:[%s1530 + $0x8] sm:$0xff]
        %v1533 = vld [vmem:[%s1530 + $0x10] sm:$0xff]
        %v1534 = vld [vmem:[%s1530 + $0x18] sm:$0xff]
        %v1535 = vld [vmem:[%s1530 + $0x20] sm:$0xff]
        %v1536 = vld [vmem:[%s1530 + $0x28] sm:$0xff]
        %v1537 = vld [vmem:[%s1530 + $0x30] sm:$0xff]
        %v1538 = vld [vmem:[%s1530 + $0x38] sm:$0xff]
        %v1539 = vld [vmem:[%s1530 + $0x40] sm:$0xff]
        %v1540 = vld [vmem:[%s1530 + $0x48] sm:$0xff]
        %v1541 = vld [vmem:[%s1530 + $0x50] sm:$0xff]
        %v1542 = vld [vmem:[%s1530 + $0x58] sm:$0xff]
        %v1543 = vld [vmem:[%s1530 + $0x60] sm:$0xff]
        %v1544 = vld [vmem:[%s1530 + $0x68] sm:$0xff]
        %v1545 = vld [vmem:[%s1530 + $0x70] sm:$0xff]
        %v1546 = vld [vmem:[%s1530 + $0x78] sm:$0xff]
        %s1547 = scalar_lea.vmem %s3, 3
        %v1548 = vld [vmem:[%s1547] sm:$0x1]
        %v1550 = vlaneseq
        %v1551 = vshrl.u32 %v1550, 7
        %v1552 = vsub.s32 0, %v1551
        %v1553 = vrot.slane %v1548, %v1552
        %1555 = vmatprep.subr.mxu0 0.0
        %1556 = vmatpush1.msra.mxu0 %v1546
        %1557 = vmatprep.subr.mxu0 0.0
        %1558 = vmatpush1.msra.mxu0 %v1545
        %1559 = vmatprep.subr.mxu0 0.0
        %1560 = vmatpush1.msra.mxu0 %v1544
        %1561 = vmatprep.subr.mxu0 0.0
        %1562 = vmatpush1.msra.mxu0 %v1543
        %1563 = vmatprep.subr.mxu0 0.0
        %1564 = vmatpush1.msra.mxu0 %v1542
        %1565 = vmatprep.subr.mxu0 0.0
        %1566 = vmatpush1.msra.mxu0 %v1541
        %1567 = vmatprep.subr.mxu0 0.0
        %1568 = vmatpush1.msra.mxu0 %v1540
        %1569 = vmatprep.subr.mxu0 0.0
        %1570 = vmatpush1.msra.mxu0 %v1539
        %1571 = vmatprep.subr.mxu0 0.0
        %1572 = vmatpush1.msra.mxu0 %v1538
        %1573 = vmatprep.subr.mxu0 0.0
        %1574 = vmatpush1.msra.mxu0 %v1537
        %1575 = vmatprep.subr.mxu0 0.0
        %1576 = vmatpush1.msra.mxu0 %v1536
        %1577 = vmatprep.subr.mxu0 0.0
        %1578 = vmatpush1.msra.mxu0 %v1535
        %1579 = vmatprep.subr.mxu0 0.0
        %1580 = vmatpush1.msra.mxu0 %v1534
        %1581 = vmatprep.subr.mxu0 0.0
        %1582 = vmatpush1.msra.mxu0 %v1533
        %1583 = vmatprep.subr.mxu0 0.0
        %1584 = vmatpush1.msra.mxu0 %v1532
        %1585 = vmatprep.subr.mxu0 0.0
        %1586 = vmatpush1.msra.mxu0 %v1531
        %1587 = vmatprep.subr.mxu0 0.0
        %1588 = vmatpush2.msra.mxu0 0.0
        %1589 = vmatprep.subr.mxu0 0.0
        %1590 = vmatpush2.msra.mxu0 0.0
        %1591 = vmatprep.subr.mxu0 0.0
        %1592 = vmatpush2.msra.mxu0 0.0
        %1593 = vmatprep.subr.mxu0 0.0
        %1594 = vmatpush2.msra.mxu0 0.0
        %1595 = vmatprep.subr.mxu0 0.0
        %1596 = vmatpush2.msra.mxu0 0.0
        %1597 = vmatprep.subr.mxu0 0.0
        %1598 = vmatpush2.msra.mxu0 0.0
        %1599 = vmatprep.subr.mxu0 0.0
        %1600 = vmatpush2.msra.mxu0 0.0
        %1601 = vmatprep.subr.mxu0 0.0
        %1602 = vmatpush2.msra.mxu0 0.0
        %1603 = vmatprep.subr.mxu0 0.0
        %1604 = vmatpush2.msra.mxu0 0.0
        %1605 = vmatprep.subr.mxu0 0.0
        %1606 = vmatpush2.msra.mxu0 0.0
        %1607 = vmatprep.subr.mxu0 0.0
        %1608 = vmatpush2.msra.mxu0 0.0
        %1609 = vmatprep.subr.mxu0 0.0
        %1610 = vmatpush2.msra.mxu0 0.0
        %1611 = vmatprep.subr.mxu0 0.0
        %1612 = vmatpush2.msra.mxu0 0.0
        %1613 = vmatprep.subr.mxu0 0.0
        %1614 = vmatpush2.msra.mxu0 0.0
        %1615 = vmatprep.subr.mxu0 0.0
        %1616 = vmatpush2.msra.mxu0 0.0
        %1617 = vmatprep.subr.mxu0 0.0
        %1618 = vmatpush2.msra.mxu0 0.0
        %1619 = vmatprep.mubr.f32.mxu0 0.0
        %1620 = vmatmul.mubr.f32.gmra.mxu0 %v1515
        %v1621 = vpop.f32.mrf.mxu0
        %v1622 = vadd.f32 %v1553, %v1621
        %v1623 = vpop.f32.mrf.mxu0
        %1624 = vmatprep.mubr.f32.mxu0 0.0
        %1625 = vmatmul.mubr.f32.gmra.mxu0 %v1516
        %v1626 = vpop.f32.mrf.mxu0
        %v1627 = vadd.f32 %v1553, %v1626
        %v1628 = vpop.f32.mrf.mxu0
        %1629 = vmatprep.mubr.f32.mxu0 0.0
        %1630 = vmatmul.mubr.f32.gmra.mxu0 %v1517
        %v1631 = vpop.f32.mrf.mxu0
        %v1632 = vadd.f32 %v1553, %v1631
        %v1633 = vpop.f32.mrf.mxu0
        %1634 = vmatprep.mubr.f32.mxu0 0.0
        %1635 = vmatmul.mubr.f32.gmra.mxu0 %v1518
        %v1636 = vpop.f32.mrf.mxu0
        %v1637 = vadd.f32 %v1553, %v1636
        %v1638 = vpop.f32.mrf.mxu0
        %1639 = vmatprep.mubr.f32.mxu0 0.0
        %1640 = vmatmul.mubr.f32.gmra.mxu0 %v1519
        %v1641 = vpop.f32.mrf.mxu0
        %v1642 = vadd.f32 %v1553, %v1641
        %v1643 = vpop.f32.mrf.mxu0
        %1644 = vmatprep.mubr.f32.mxu0 0.0
        %1645 = vmatmul.mubr.f32.gmra.mxu0 %v1520
        %v1646 = vpop.f32.mrf.mxu0
        %v1647 = vadd.f32 %v1553, %v1646
        %v1648 = vpop.f32.mrf.mxu0
        %1649 = vmatprep.mubr.f32.mxu0 0.0
        %1650 = vmatmul.mubr.f32.gmra.mxu0 %v1521
        %v1651 = vpop.f32.mrf.mxu0
        %v1652 = vadd.f32 %v1553, %v1651
        %v1653 = vpop.f32.mrf.mxu0
        %1654 = vmatprep.mubr.f32.mxu0 0.0
        %1655 = vmatmul.mubr.f32.gmra.mxu0 %v1522
        %v1656 = vpop.f32.mrf.mxu0
        %v1657 = vadd.f32 %v1553, %v1656
        %v1658 = vpop.f32.mrf.mxu0
        %1659 = vmatprep.mubr.f32.mxu0 0.0
        %1660 = vmatmul.mubr.f32.gmra.mxu0 %v1523
        %v1661 = vpop.f32.mrf.mxu0
        %v1662 = vadd.f32 %v1553, %v1661
        %v1663 = vpop.f32.mrf.mxu0
        %1664 = vmatprep.mubr.f32.mxu0 0.0
        %1665 = vmatmul.mubr.f32.gmra.mxu0 %v1524
        %v1666 = vpop.f32.mrf.mxu0
        %v1667 = vadd.f32 %v1553, %v1666
        %v1668 = vpop.f32.mrf.mxu0
        %1669 = vmatprep.mubr.f32.mxu0 0.0
        %1670 = vmatmul.mubr.f32.gmra.mxu0 %v1525
        %v1671 = vpop.f32.mrf.mxu0
        %v1672 = vadd.f32 %v1553, %v1671
        %v1673 = vpop.f32.mrf.mxu0
        %1674 = vmatprep.mubr.f32.mxu0 0.0
        %1675 = vmatmul.mubr.f32.gmra.mxu0 %v1526
        %v1676 = vpop.f32.mrf.mxu0
        %v1677 = vadd.f32 %v1553, %v1676
        %v1678 = vpop.f32.mrf.mxu0
        %1679 = vmatprep.mubr.f32.mxu0 0.0
        %1680 = vmatmul.mubr.f32.gmra.mxu0 %v1527
        %v1681 = vpop.f32.mrf.mxu0
        %v1682 = vadd.f32 %v1553, %v1681
        %v1683 = vpop.f32.mrf.mxu0
        %1684 = vmatprep.mubr.f32.mxu0 0.0
        %1685 = vmatmul.mubr.f32.gmra.mxu0 %v1528
        %v1686 = vpop.f32.mrf.mxu0
        %v1687 = vadd.f32 %v1553, %v1686
        %v1688 = vpop.f32.mrf.mxu0
        %1689 = vmatprep.mubr.f32.mxu0 0.0
        %1690 = vmatmul.mubr.f32.gmra.mxu0 %v1529
        %v1691 = vpop.f32.mrf.mxu0
        %v1692 = vadd.f32 %v1553, %v1691
        %v1693 = vpop.f32.mrf.mxu0
        %1694 = vdwg.mxu0
        %v1695 = vmul.f32 %v1622, 100.0
        %v1696 = vmul.f32 %v1627, 100.0
        %v1697 = vmul.f32 %v1632, 100.0
        %v1698 = vmul.f32 %v1637, 100.0
        %v1699 = vmul.f32 %v1642, 100.0
        %v1700 = vmul.f32 %v1647, 100.0
        %v1701 = vmul.f32 %v1652, 100.0
        %v1702 = vmul.f32 %v1657, 100.0
        %v1703 = vmul.f32 %v1662, 100.0
        %v1704 = vmul.f32 %v1667, 100.0
        %v1705 = vmul.f32 %v1672, 100.0
        %v1706 = vmul.f32 %v1677, 100.0
        %v1707 = vmul.f32 %v1682, 100.0
        %v1708 = vmul.f32 %v1687, 100.0
        %v1709 = vmul.f32 %v1692, 100.0
        %v1710 = vmax.f32 %v1695, 0.0
        %v1711 = vmax.f32 %v1696, 0.0
        %v1712 = vmax.f32 %v1697, 0.0
        %v1713 = vmax.f32 %v1698, 0.0
        %v1714 = vmax.f32 %v1699, 0.0
        %v1715 = vmax.f32 %v1700, 0.0
        %v1716 = vmax.f32 %v1701, 0.0
        %v1717 = vmax.f32 %v1702, 0.0
        %v1718 = vmax.f32 %v1703, 0.0
        %v1719 = vmax.f32 %v1704, 0.0
        %v1720 = vmax.f32 %v1705, 0.0
        %v1721 = vmax.f32 %v1706, 0.0
        %v1722 = vmax.f32 %v1707, 0.0
        %v1723 = vmax.f32 %v1708, 0.0
        %v1724 = vmax.f32 %v1709, 0.0
        %v1725 = vand.u32 2147483647, %v1695
        %v1726 = vand.u32 2147483647, %v1696
        %v1727 = vand.u32 2147483647, %v1697
        %v1728 = vand.u32 2147483647, %v1698
        %v1729 = vand.u32 2147483647, %v1699
        %v1730 = vand.u32 2147483647, %v1700
        %v1731 = vand.u32 2147483647, %v1701
        %v1732 = vand.u32 2147483647, %v1702
        %v1733 = vand.u32 2147483647, %v1703
        %v1734 = vand.u32 2147483647, %v1704
        %v1735 = vand.u32 2147483647, %v1705
        %v1736 = vand.u32 2147483647, %v1706
        %v1737 = vand.u32 2147483647, %v1707
        %v1738 = vand.u32 2147483647, %v1708
        %v1739 = vand.u32 2147483647, %v1709
        %v1740 = vsub.f32 0.0, %v1725
        %v1741 = vsub.f32 0.0, %v1726
        %v1742 = vsub.f32 0.0, %v1727
        %v1743 = vsub.f32 0.0, %v1728
        %v1744 = vsub.f32 0.0, %v1729
        %v1745 = vsub.f32 0.0, %v1730
        %v1746 = vsub.f32 0.0, %v1731
        %v1747 = vsub.f32 0.0, %v1732
        %v1748 = vsub.f32 0.0, %v1733
        %v1749 = vsub.f32 0.0, %v1734
        %v1750 = vsub.f32 0.0, %v1735
        %v1751 = vsub.f32 0.0, %v1736
        %v1752 = vsub.f32 0.0, %v1737
        %v1753 = vsub.f32 0.0, %v1738
        %v1754 = vsub.f32 0.0, %v1739
        %v1755 = vmul.f32 %v1740, 1.442695
        %v1756 = vpow.pop %v1755
        %v1757 = vmul.f32 %v1741, 1.442695
        %v1758 = vpow.pop %v1757
        %v1759 = vmul.f32 %v1742, 1.442695
        %v1760 = vpow.pop %v1759
        %v1761 = vmul.f32 %v1743, 1.442695
        %v1762 = vpow.pop %v1761
        %v1763 = vmul.f32 %v1744, 1.442695
        %v1764 = vpow.pop %v1763
        %v1765 = vmul.f32 %v1745, 1.442695
        %v1766 = vpow.pop %v1765
        %v1767 = vmul.f32 %v1746, 1.442695
        %v1768 = vpow.pop %v1767
        %v1769 = vmul.f32 %v1747, 1.442695
        %v1770 = vpow.pop %v1769
        %v1771 = vmul.f32 %v1748, 1.442695
        %v1772 = vpow.pop %v1771
        %v1773 = vmul.f32 %v1749, 1.442695
        %v1774 = vpow.pop %v1773
        %v1775 = vmul.f32 %v1750, 1.442695
        %v1776 = vpow.pop %v1775
        %v1777 = vmul.f32 %v1751, 1.442695
        %v1778 = vpow.pop %v1777
        %v1779 = vmul.f32 %v1752, 1.442695
        %v1780 = vpow.pop %v1779
        %v1781 = vmul.f32 %v1753, 1.442695
        %v1782 = vpow.pop %v1781
        %v1783 = vmul.f32 %v1754, 1.442695
        %v1784 = vpow.pop %v1783
        %v1785 = vadd.f32 %v1756, 1.0
        %v1786 = vlog2.pop %v1785
        %v1787 = vmul.f32 %v1786, 0.6931472
        %v1788 = vmul.f32 -0.5, %v1756
        %v1789 = vadd.f32 %v1788, 1.0
        %v1790 = vmul.f32 %v1789, %v1756
        %v1791 = vand.u32 2147483647, %v1756
        %vm1792 = vcmp.lt.f32.partialorder %v1791, 0.0004427343
        %v1793 = vsel %vm1792, %v1790, %v1787
        %v1794 = vadd.f32 %v1758, 1.0
        %v1795 = vlog2.pop %v1794
        %v1796 = vmul.f32 %v1795, 0.6931472
        %v1797 = vmul.f32 -0.5, %v1758
        %v1798 = vadd.f32 %v1797, 1.0
        %v1799 = vmul.f32 %v1798, %v1758
        %v1800 = vand.u32 2147483647, %v1758
        %vm1801 = vcmp.lt.f32.partialorder %v1800, 0.0004427343
        %v1802 = vsel %vm1801, %v1799, %v1796
        %v1803 = vadd.f32 %v1760, 1.0
        %v1804 = vlog2.pop %v1803
        %v1805 = vmul.f32 %v1804, 0.6931472
        %v1806 = vmul.f32 -0.5, %v1760
        %v1807 = vadd.f32 %v1806, 1.0
        %v1808 = vmul.f32 %v1807, %v1760
        %v1809 = vand.u32 2147483647, %v1760
        %vm1810 = vcmp.lt.f32.partialorder %v1809, 0.0004427343
        %v1811 = vsel %vm1810, %v1808, %v1805
        %v1812 = vadd.f32 %v1762, 1.0
        %v1813 = vlog2.pop %v1812
        %v1814 = vmul.f32 %v1813, 0.6931472
        %v1815 = vmul.f32 -0.5, %v1762
        %v1816 = vadd.f32 %v1815, 1.0
        %v1817 = vmul.f32 %v1816, %v1762
        %v1818 = vand.u32 2147483647, %v1762
        %vm1819 = vcmp.lt.f32.partialorder %v1818, 0.0004427343
        %v1820 = vsel %vm1819, %v1817, %v1814
        %v1821 = vadd.f32 %v1764, 1.0
        %v1822 = vlog2.pop %v1821
        %v1823 = vmul.f32 %v1822, 0.6931472
        %v1824 = vmul.f32 -0.5, %v1764
        %v1825 = vadd.f32 %v1824, 1.0
        %v1826 = vmul.f32 %v1825, %v1764
        %v1827 = vand.u32 2147483647, %v1764
        %vm1828 = vcmp.lt.f32.partialorder %v1827, 0.0004427343
        %v1829 = vsel %vm1828, %v1826, %v1823
        %v1830 = vadd.f32 %v1766, 1.0
        %v1831 = vlog2.pop %v1830
        %v1832 = vmul.f32 %v1831, 0.6931472
        %v1833 = vmul.f32 -0.5, %v1766
        %v1834 = vadd.f32 %v1833, 1.0
        %v1835 = vmul.f32 %v1834, %v1766
        %v1836 = vand.u32 2147483647, %v1766
        %vm1837 = vcmp.lt.f32.partialorder %v1836, 0.0004427343
        %v1838 = vsel %vm1837, %v1835, %v1832
        %v1839 = vadd.f32 %v1768, 1.0
        %v1840 = vlog2.pop %v1839
        %v1841 = vmul.f32 %v1840, 0.6931472
        %v1842 = vmul.f32 -0.5, %v1768
        %v1843 = vadd.f32 %v1842, 1.0
        %v1844 = vmul.f32 %v1843, %v1768
        %v1845 = vand.u32 2147483647, %v1768
        %vm1846 = vcmp.lt.f32.partialorder %v1845, 0.0004427343
        %v1847 = vsel %vm1846, %v1844, %v1841
        %v1848 = vadd.f32 %v1770, 1.0
        %v1849 = vlog2.pop %v1848
        %v1850 = vmul.f32 %v1849, 0.6931472
        %v1851 = vmul.f32 -0.5, %v1770
        %v1852 = vadd.f32 %v1851, 1.0
        %v1853 = vmul.f32 %v1852, %v1770
        %v1854 = vand.u32 2147483647, %v1770
        %vm1855 = vcmp.lt.f32.partialorder %v1854, 0.0004427343
        %v1856 = vsel %vm1855, %v1853, %v1850
        %v1857 = vadd.f32 %v1772, 1.0
        %v1858 = vlog2.pop %v1857
        %v1859 = vmul.f32 %v1858, 0.6931472
        %v1860 = vmul.f32 -0.5, %v1772
        %v1861 = vadd.f32 %v1860, 1.0
        %v1862 = vmul.f32 %v1861, %v1772
        %v1863 = vand.u32 2147483647, %v1772
        %vm1864 = vcmp.lt.f32.partialorder %v1863, 0.0004427343
        %v1865 = vsel %vm1864, %v1862, %v1859
        %v1866 = vadd.f32 %v1774, 1.0
        %v1867 = vlog2.pop %v1866
        %v1868 = vmul.f32 %v1867, 0.6931472
        %v1869 = vmul.f32 -0.5, %v1774
        %v1870 = vadd.f32 %v1869, 1.0
        %v1871 = vmul.f32 %v1870, %v1774
        %v1872 = vand.u32 2147483647, %v1774
        %vm1873 = vcmp.lt.f32.partialorder %v1872, 0.0004427343
        %v1874 = vsel %vm1873, %v1871, %v1868
        %v1875 = vadd.f32 %v1776, 1.0
        %v1876 = vlog2.pop %v1875
        %v1877 = vmul.f32 %v1876, 0.6931472
        %v1878 = vmul.f32 -0.5, %v1776
        %v1879 = vadd.f32 %v1878, 1.0
        %v1880 = vmul.f32 %v1879, %v1776
        %v1881 = vand.u32 2147483647, %v1776
        %vm1882 = vcmp.lt.f32.partialorder %v1881, 0.0004427343
        %v1883 = vsel %vm1882, %v1880, %v1877
        %v1884 = vadd.f32 %v1778, 1.0
        %v1885 = vlog2.pop %v1884
        %v1886 = vmul.f32 %v1885, 0.6931472
        %v1887 = vmul.f32 -0.5, %v1778
        %v1888 = vadd.f32 %v1887, 1.0
        %v1889 = vmul.f32 %v1888, %v1778
        %v1890 = vand.u32 2147483647, %v1778
        %vm1891 = vcmp.lt.f32.partialorder %v1890, 0.0004427343
        %v1892 = vsel %vm1891, %v1889, %v1886
        %v1893 = vadd.f32 %v1780, 1.0
        %v1894 = vlog2.pop %v1893
        %v1895 = vmul.f32 %v1894, 0.6931472
        %v1896 = vmul.f32 -0.5, %v1780
        %v1897 = vadd.f32 %v1896, 1.0
        %v1898 = vmul.f32 %v1897, %v1780
        %v1899 = vand.u32 2147483647, %v1780
        %vm1900 = vcmp.lt.f32.partialorder %v1899, 0.0004427343
        %v1901 = vsel %vm1900, %v1898, %v1895
        %v1902 = vadd.f32 %v1782, 1.0
        %v1903 = vlog2.pop %v1902
        %v1904 = vmul.f32 %v1903, 0.6931472
        %v1905 = vmul.f32 -0.5, %v1782
        %v1906 = vadd.f32 %v1905, 1.0
        %v1907 = vmul.f32 %v1906, %v1782
        %v1908 = vand.u32 2147483647, %v1782
        %vm1909 = vcmp.lt.f32.partialorder %v1908, 0.0004427343
        %v1910 = vsel %vm1909, %v1907, %v1904
        %v1911 = vadd.f32 %v1784, 1.0
        %v1912 = vlog2.pop %v1911
        %v1913 = vmul.f32 %v1912, 0.6931472
        %v1914 = vmul.f32 -0.5, %v1784
        %v1915 = vadd.f32 %v1914, 1.0
        %v1916 = vmul.f32 %v1915, %v1784
        %v1917 = vand.u32 2147483647, %v1784
        %vm1918 = vcmp.lt.f32.partialorder %v1917, 0.0004427343
        %v1919 = vsel %vm1918, %v1916, %v1913
        %v1920 = vadd.f32 %v1710, %v1793
        %v1921 = vadd.f32 %v1711, %v1802
        %v1922 = vadd.f32 %v1712, %v1811
        %v1923 = vadd.f32 %v1713, %v1820
        %v1924 = vadd.f32 %v1714, %v1829
        %v1925 = vadd.f32 %v1715, %v1838
        %v1926 = vadd.f32 %v1716, %v1847
        %v1927 = vadd.f32 %v1717, %v1856
        %v1928 = vadd.f32 %v1718, %v1865
        %v1929 = vadd.f32 %v1719, %v1874
        %v1930 = vadd.f32 %v1720, %v1883
        %v1931 = vadd.f32 %v1721, %v1892
        %v1932 = vadd.f32 %v1722, %v1901
        %v1933 = vadd.f32 %v1723, %v1910
        %v1934 = vadd.f32 %v1724, %v1919
        %v1935 = vmul.f32 %v1920, 0.01
        %v1936 = vmul.f32 %v1921, 0.01
        %v1937 = vmul.f32 %v1922, 0.01
        %v1938 = vmul.f32 %v1923, 0.01
        %v1939 = vmul.f32 %v1924, 0.01
        %v1940 = vmul.f32 %v1925, 0.01
        %v1941 = vmul.f32 %v1926, 0.01
        %v1942 = vmul.f32 %v1927, 0.01
        %v1943 = vmul.f32 %v1928, 0.01
        %v1944 = vmul.f32 %v1929, 0.01
        %v1945 = vmul.f32 %v1930, 0.01
        %v1946 = vmul.f32 %v1931, 0.01
        %v1947 = vmul.f32 %v1932, 0.01
        %v1948 = vmul.f32 %v1933, 0.01
        %v1949 = vmul.f32 %v1934, 0.01
        %v1950 = vld [vmem:[%s4] sm:$0xff]
        %v1951 = vld [vmem:[%s4 + $0x8] sm:$0xff]
        %v1952 = vld [vmem:[%s4 + $0x10] sm:$0xff]
        %v1953 = vld [vmem:[%s4 + $0x18] sm:$0xff]
        %v1954 = vld [vmem:[%s4 + $0x20] sm:$0xff]
        %v1955 = vld [vmem:[%s4 + $0x28] sm:$0xff]
        %v1956 = vld [vmem:[%s4 + $0x30] sm:$0xff]
        %v1957 = vld [vmem:[%s4 + $0x38] sm:$0xff]
        %v1958 = vld [vmem:[%s4 + $0x40] sm:$0xff]
        %v1959 = vld [vmem:[%s4 + $0x48] sm:$0xff]
        %v1960 = vld [vmem:[%s4 + $0x50] sm:$0xff]
        %v1961 = vld [vmem:[%s4 + $0x58] sm:$0xff]
        %v1962 = vld [vmem:[%s4 + $0x60] sm:$0xff]
        %v1963 = vld [vmem:[%s4 + $0x68] sm:$0xff]
        %v1964 = vld [vmem:[%s4 + $0x70] sm:$0xff]
        %v1965 = vld [vmem:[%s4 + $0x78] sm:$0xff]
        %v1966 = vld [vmem:[%s4 + $0x80] sm:$0xff]
        %v1967 = vld [vmem:[%s4 + $0x88] sm:$0xff]
        %v1968 = vld [vmem:[%s4 + $0x90] sm:$0xff]
        %v1969 = vld [vmem:[%s4 + $0x98] sm:$0xff]
        %v1970 = vld [vmem:[%s4 + $0xa0] sm:$0xff]
        %v1971 = vld [vmem:[%s4 + $0xa8] sm:$0xff]
        %v1972 = vld [vmem:[%s4 + $0xb0] sm:$0xff]
        %v1973 = vld [vmem:[%s4 + $0xb8] sm:$0xff]
        %v1974 = vld [vmem:[%s4 + $0xc0] sm:$0xff]
        %v1975 = vld [vmem:[%s4 + $0xc8] sm:$0xff]
        %v1976 = vld [vmem:[%s4 + $0xd0] sm:$0xff]
        %v1977 = vld [vmem:[%s4 + $0xd8] sm:$0xff]
        %v1978 = vld [vmem:[%s4 + $0xe0] sm:$0xff]
        %v1979 = vld [vmem:[%s4 + $0xe8] sm:$0xff]
        %v1980 = vld [vmem:[%s4 + $0xf0] sm:$0xff]
        %v1981 = vld [vmem:[%s4 + $0xf8] sm:$0xff]
        %1982 = vmatprep.subr.mxu0 %v1981
        %1983 = vmatpush1.msra.mxu0 %v1980
        %1984 = vmatprep.subr.mxu0 %v1979
        %1985 = vmatpush1.msra.mxu0 %v1978
        %1986 = vmatprep.subr.mxu0 %v1977
        %1987 = vmatpush1.msra.mxu0 %v1976
        %1988 = vmatprep.subr.mxu0 %v1975
        %1989 = vmatpush1.msra.mxu0 %v1974
        %1990 = vmatprep.subr.mxu0 %v1973
        %1991 = vmatpush1.msra.mxu0 %v1972
        %1992 = vmatprep.subr.mxu0 %v1971
        %1993 = vmatpush1.msra.mxu0 %v1970
        %1994 = vmatprep.subr.mxu0 %v1969
        %1995 = vmatpush1.msra.mxu0 %v1968
        %1996 = vmatprep.subr.mxu0 %v1967
        %1997 = vmatpush1.msra.mxu0 %v1966
        %1998 = vmatprep.subr.mxu0 %v1965
        %1999 = vmatpush1.msra.mxu0 %v1964
        %2000 = vmatprep.subr.mxu0 %v1963
        %2001 = vmatpush1.msra.mxu0 %v1962
        %2002 = vmatprep.subr.mxu0 %v1961
        %2003 = vmatpush1.msra.mxu0 %v1960
        %2004 = vmatprep.subr.mxu0 %v1959
        %2005 = vmatpush1.msra.mxu0 %v1958
        %2006 = vmatprep.subr.mxu0 %v1957
        %2007 = vmatpush1.msra.mxu0 %v1956
        %2008 = vmatprep.subr.mxu0 %v1955
        %2009 = vmatpush1.msra.mxu0 %v1954
        %2010 = vmatprep.subr.mxu0 %v1953
        %2011 = vmatpush1.msra.mxu0 %v1952
        %2012 = vmatprep.subr.mxu0 %v1951
        %2013 = vmatpush1.msra.mxu0 %v1950
        %2014 = vmatprep.subr.mxu0 0.0
        %2015 = vmatpush2.msra.mxu0 0.0
        %2016 = vmatprep.subr.mxu0 0.0
        %2017 = vmatpush2.msra.mxu0 0.0
        %2018 = vmatprep.subr.mxu0 0.0
        %2019 = vmatpush2.msra.mxu0 0.0
        %2020 = vmatprep.subr.mxu0 0.0
        %2021 = vmatpush2.msra.mxu0 0.0
        %2022 = vmatprep.subr.mxu0 0.0
        %2023 = vmatpush2.msra.mxu0 0.0
        %2024 = vmatprep.subr.mxu0 0.0
        %2025 = vmatpush2.msra.mxu0 0.0
        %2026 = vmatprep.subr.mxu0 0.0
        %2027 = vmatpush2.msra.mxu0 0.0
        %2028 = vmatprep.subr.mxu0 0.0
        %2029 = vmatpush2.msra.mxu0 0.0
        %2030 = vmatprep.subr.mxu0 0.0
        %2031 = vmatpush2.msra.mxu0 0.0
        %2032 = vmatprep.subr.mxu0 0.0
        %2033 = vmatpush2.msra.mxu0 0.0
        %2034 = vmatprep.subr.mxu0 0.0
        %2035 = vmatpush2.msra.mxu0 0.0
        %2036 = vmatprep.subr.mxu0 0.0
        %2037 = vmatpush2.msra.mxu0 0.0
        %2038 = vmatprep.subr.mxu0 0.0
        %2039 = vmatpush2.msra.mxu0 0.0
        %2040 = vmatprep.subr.mxu0 0.0
        %2041 = vmatpush2.msra.mxu0 0.0
        %2042 = vmatprep.subr.mxu0 0.0
        %2043 = vmatpush2.msra.mxu0 0.0
        %2044 = vmatprep.subr.mxu0 0.0
        %2045 = vmatpush2.msra.mxu0 0.0
        %2046 = vmatprep.mubr.f32.mxu0 0.0
        %2047 = vmatmul.mubr.f32.gmra.mxu0 %v1935
        %v2048 = vpop.f32.mrf.mxu0
        %v2049 = vadd.f32 0.0, %v2048
        %v2050 = vpop.f32.mrf.mxu0
        %v2051 = vadd.f32 0.0, %v2050
        %2052 = vmatprep.mubr.f32.mxu0 0.0
        %2053 = vmatmul.mubr.f32.gmra.mxu0 %v1936
        %v2054 = vpop.f32.mrf.mxu0
        %v2055 = vadd.f32 0.0, %v2054
        %v2056 = vpop.f32.mrf.mxu0
        %v2057 = vadd.f32 0.0, %v2056
        %2058 = vmatprep.mubr.f32.mxu0 0.0
        %2059 = vmatmul.mubr.f32.gmra.mxu0 %v1937
        %v2060 = vpop.f32.mrf.mxu0
        %v2061 = vadd.f32 0.0, %v2060
        %v2062 = vpop.f32.mrf.mxu0
        %v2063 = vadd.f32 0.0, %v2062
        %2064 = vmatprep.mubr.f32.mxu0 0.0
        %2065 = vmatmul.mubr.f32.gmra.mxu0 %v1938
        %v2066 = vpop.f32.mrf.mxu0
        %v2067 = vadd.f32 0.0, %v2066
        %v2068 = vpop.f32.mrf.mxu0
        %v2069 = vadd.f32 0.0, %v2068
        %2070 = vmatprep.mubr.f32.mxu0 0.0
        %2071 = vmatmul.mubr.f32.gmra.mxu0 %v1939
        %v2072 = vpop.f32.mrf.mxu0
        %v2073 = vadd.f32 0.0, %v2072
        %v2074 = vpop.f32.mrf.mxu0
        %v2075 = vadd.f32 0.0, %v2074
        %2076 = vmatprep.mubr.f32.mxu0 0.0
        %2077 = vmatmul.mubr.f32.gmra.mxu0 %v1940
        %v2078 = vpop.f32.mrf.mxu0
        %v2079 = vadd.f32 0.0, %v2078
        %v2080 = vpop.f32.mrf.mxu0
        %v2081 = vadd.f32 0.0, %v2080
        %2082 = vmatprep.mubr.f32.mxu0 0.0
        %2083 = vmatmul.mubr.f32.gmra.mxu0 %v1941
        %v2084 = vpop.f32.mrf.mxu0
        %v2085 = vadd.f32 0.0, %v2084
        %v2086 = vpop.f32.mrf.mxu0
        %v2087 = vadd.f32 0.0, %v2086
        %2088 = vmatprep.mubr.f32.mxu0 0.0
        %2089 = vmatmul.mubr.f32.gmra.mxu0 %v1942
        %v2090 = vpop.f32.mrf.mxu0
        %v2091 = vadd.f32 0.0, %v2090
        %v2092 = vpop.f32.mrf.mxu0
        %v2093 = vadd.f32 0.0, %v2092
        %2094 = vmatprep.mubr.f32.mxu0 0.0
        %2095 = vmatmul.mubr.f32.gmra.mxu0 %v1943
        %v2096 = vpop.f32.mrf.mxu0
        %v2097 = vadd.f32 0.0, %v2096
        %v2098 = vpop.f32.mrf.mxu0
        %v2099 = vadd.f32 0.0, %v2098
        %2100 = vmatprep.mubr.f32.mxu0 0.0
        %2101 = vmatmul.mubr.f32.gmra.mxu0 %v1944
        %v2102 = vpop.f32.mrf.mxu0
        %v2103 = vadd.f32 0.0, %v2102
        %v2104 = vpop.f32.mrf.mxu0
        %v2105 = vadd.f32 0.0, %v2104
        %2106 = vmatprep.mubr.f32.mxu0 0.0
        %2107 = vmatmul.mubr.f32.gmra.mxu0 %v1945
        %v2108 = vpop.f32.mrf.mxu0
        %v2109 = vadd.f32 0.0, %v2108
        %v2110 = vpop.f32.mrf.mxu0
        %v2111 = vadd.f32 0.0, %v2110
        %2112 = vmatprep.mubr.f32.mxu0 0.0
        %2113 = vmatmul.mubr.f32.gmra.mxu0 %v1946
        %v2114 = vpop.f32.mrf.mxu0
        %v2115 = vadd.f32 0.0, %v2114
        %v2116 = vpop.f32.mrf.mxu0
        %v2117 = vadd.f32 0.0, %v2116
        %2118 = vmatprep.mubr.f32.mxu0 0.0
        %2119 = vmatmul.mubr.f32.gmra.mxu0 %v1947
        %v2120 = vpop.f32.mrf.mxu0
        %v2121 = vadd.f32 0.0, %v2120
        %v2122 = vpop.f32.mrf.mxu0
        %v2123 = vadd.f32 0.0, %v2122
        %2124 = vmatprep.mubr.f32.mxu0 0.0
        %2125 = vmatmul.mubr.f32.gmra.mxu0 %v1948
        %v2126 = vpop.f32.mrf.mxu0
        %v2127 = vadd.f32 0.0, %v2126
        %v2128 = vpop.f32.mrf.mxu0
        %v2129 = vadd.f32 0.0, %v2128
        %2130 = vmatprep.mubr.f32.mxu0 0.0
        %2131 = vmatmul.mubr.f32.gmra.mxu0 %v1949
        %v2132 = vpop.f32.mrf.mxu0
        %v2133 = vadd.f32 0.0, %v2132
        %v2134 = vpop.f32.mrf.mxu0
        %v2135 = vadd.f32 0.0, %v2134
        %2136 = vdwg.mxu0
        %2137 = vst [vmem:[%s218] sm:$0xff] %v2049
        %2138 = vst [vmem:[%s218 + $0x8] sm:$0xff] %v2051
        %2139 = vst [vmem:[%s218 + $0x10] sm:$0xff] %v2055
        %2140 = vst [vmem:[%s218 + $0x18] sm:$0xff] %v2057
        %2141 = vst [vmem:[%s218 + $0x20] sm:$0xff] %v2061
        %2142 = vst [vmem:[%s218 + $0x28] sm:$0xff] %v2063
        %2143 = vst [vmem:[%s218 + $0x30] sm:$0xff] %v2067
        %2144 = vst [vmem:[%s218 + $0x38] sm:$0xff] %v2069
        %2145 = vst [vmem:[%s218 + $0x40] sm:$0xff] %v2073
        %2146 = vst [vmem:[%s218 + $0x48] sm:$0xff] %v2075
        %2147 = vst [vmem:[%s218 + $0x50] sm:$0xff] %v2079
        %2148 = vst [vmem:[%s218 + $0x58] sm:$0xff] %v2081
        %2149 = vst [vmem:[%s218 + $0x60] sm:$0xff] %v2085
        %2150 = vst [vmem:[%s218 + $0x68] sm:$0xff] %v2087
        %2151 = vst [vmem:[%s218 + $0x70] sm:$0xff] %v2091
        %2152 = vst [vmem:[%s218 + $0x78] sm:$0xff] %v2093
        %2153 = vst [vmem:[%s218 + $0x80] sm:$0xff] %v2097
        %2154 = vst [vmem:[%s218 + $0x88] sm:$0xff] %v2099
        %2155 = vst [vmem:[%s218 + $0x90] sm:$0xff] %v2103
        %2156 = vst [vmem:[%s218 + $0x98] sm:$0xff] %v2105
        %2157 = vst [vmem:[%s218 + $0xa0] sm:$0xff] %v2109
        %2158 = vst [vmem:[%s218 + $0xa8] sm:$0xff] %v2111
        %2159 = vst [vmem:[%s218 + $0xb0] sm:$0xff] %v2115
        %2160 = vst [vmem:[%s218 + $0xb8] sm:$0xff] %v2117
        %2161 = vst [vmem:[%s218 + $0xc0] sm:$0xff] %v2121
        %2162 = vst [vmem:[%s218 + $0xc8] sm:$0xff] %v2123
        %2163 = vst [vmem:[%s218 + $0xd0] sm:$0xff] %v2127
        %2164 = vst [vmem:[%s218 + $0xd8] sm:$0xff] %v2129
        %2165 = vst [vmem:[%s218 + $0xe0] sm:$0xff] %v2133
        %2166 = vst [vmem:[%s218 + $0xe8] sm:$0xff] %v2135
        %s2167 = sand.u32 %s137, 1
        %s2168 = scalar_lea.sflag [#allocation3], %s2167
        %s2169 = sand.u32 %s137, 1
        %s2170 = smul.addr %s2169, 240
        %s2171 = scalar_lea.vmem [#allocation2], %s2170
        // Predicated region
        $region41: #{tpu_custom_call.1} parent=39 // pred_check
          %p2172 = pneg %p147
        $region42: #{tpu_custom_call.1} parent=39 // pred_check_branch
          %2174 = sbr.rel (%p2172) target = $region44
        $region43: #{tpu_custom_call.1} parent=39 // pred_region
          %s2175 = smul.u32 15, %s19
          %s2177 = ssub.s32 3840, 3840
          %2178 = vsyncadd %s2168, %s2177
          %s2179 = smul.addr %s2175, 2
          %s2180 = smul.addr %s2179, 128
          %s2181 = scalar_lea.hbm %s5, %s2180
          %s2182 = sshll.u32 %s2171, 4
          %s2183 = int_to_ptr.vmem [resolvable:$true] %s2182
          %2188 = dma.vmem_to_hbm [thread:$0]  %s2183, 3840, %s2181, %s2168, 256, 256, 16
        $region44: #{tpu_custom_call.1} parent=39 // pred_fallthru
          _
      $region40: #{tpu_custom_call.1} parent=5 // pred_fallthru
        _
      %p2189 = scmp.le.s32.totalorder 2, %s14
      // Predicated region
      $region45: #{tpu_custom_call.1} parent=5 // pred_check
        %p2190 = pneg %p2189
      $region46: #{tpu_custom_call.1} parent=5 // pred_check_branch
        %2192 = sbr.rel (%p2190) target = $region48
      $region47: #{tpu_custom_call.1} parent=5 // pred_region
        %s2193 = ssub.s32 %s14, 2
        // Predicated region
        $region49: #{tpu_custom_call.1} parent=47 // pred_check
          %p2194 = pneg %p153
        $region50: #{tpu_custom_call.1} parent=47 // pred_check_branch
          %2196 = sbr.rel (%p2194) target = $region52
        $region51: #{tpu_custom_call.1} parent=47 // pred_region
          %s2197 = sand.u32 %s138, 1
          %s2198 = scalar_lea.sflag [#allocation3], %s2197
          %s2199 = sand.u32 %s138, 1
          %s2200 = smul.addr %s2199, 240
          %s2201 = scalar_lea.vmem [#allocation2], %s2200
          %2202 = dma.done %s2198, 3840
        $region52: #{tpu_custom_call.1} parent=47 // pred_fallthru
          _
      $region48: #{tpu_custom_call.1} parent=5 // pred_fallthru
        _
    $region6: #{tpu_custom_call.1} parent=1 // loop_footer
      %s18 = sadd.s32 1, %s14
    $region7: #{tpu_custom_call.1} parent=1 // loop_footer_branch
      %13 = sbr.rel target = $region3
    $region8: #{tpu_custom_call.1} parent=1 // loop_exit
      _
    %2203 = vsyncpa [#allocation3], 1
    %s2204 = scalar_lea.sflag [#allocation3], 1
    %2205 = vsyncpa %s2204, 1

</llo_original>
